<compile_context>
chip_gen: v7x
topology: tpu7x:2x2x1
jax: 0.10.0
libtpu: 0.0.40
codegen_flags: <defaults>
</compile_context>

<pallas_src>
import functools

import jax
import jax.numpy as jnp
from jax.experimental import pallas as pl
from jax.experimental.pallas import tpu as pltpu


def _resblock_kernel(x_ref, w1_ref, b1_ref, w2_ref, b2_ref, o_ref, *, h, w):
    """Fused ResBlock forward for the whole batch.

    x_ref : (R, HW) float32, R = N*C, HW = H*W.  Each row is one (image,
            channel) plane, row-major flattened spatial axis on lanes.
    w*_ref: (9, R, R) bfloat16 block-diagonal tap weights, tap index t = 3*ky+kx.
    b*_ref: (R, 1) float32 per-row (= per (image, channel)) bias.
    o_ref : (R, HW) float32 output.
    """
    r = x_ref.shape[0]
    hw = h * w

    # Spatial-boundary masks on the flattened (lane) axis, shared by both convs.
    q = jax.lax.broadcasted_iota(jnp.int32, (r, hw), 1)
    col = q % w
    col_first = col == 0            # j == 0   -> reflect to j = 1
    col_last = col == (w - 1)       # j == W-1 -> reflect to j = W-2
    row_first = q < w               # i == 0   -> reflect to i = 1
    row_last = q >= (hw - w)        # i == H-1 -> reflect to i = H-2

    def conv3x3(act, wt_ref, b_ref):
        """ReflectionPad2d(1) + 3x3 conv + bias.  act: (R, HW) f32 -> (R, HW) f32."""
        # +/-1 lane rotations (XLU); circular wrap positions are fixed up by masks.
        left = pltpu.roll(act, 1, 1)           # value at column j-1
        right = pltpu.roll(act, hw - 1, 1)     # value at column j+1
        col_taps = (
            jnp.where(col_first, right, left),   # kx=0: x[i, reflect(j-1)]
            act,                                 # kx=1: x[i, j]
            jnp.where(col_last, left, right),    # kx=2: x[i, reflect(j+1)]
        )
        acc = jnp.zeros((r, hw), jnp.float32)
        for kx in range(3):
            cs = col_taps[kx]
            up = pltpu.roll(cs, w, 1)            # value at row i-1
            dn = pltpu.roll(cs, hw - w, 1)       # value at row i+1
            taps = (
                jnp.where(row_first, dn, up),    # ky=0: x[reflect(i-1), .]
                cs,                              # ky=1: x[i, .]
                jnp.where(row_last, up, dn),     # ky=2: x[reflect(i+1), .]
            )
            for ky in range(3):
                # bf16 x bf16 MXU matmul, f32 accumulation.
                acc += jnp.dot(
                    wt_ref[3 * ky + kx],
                    taps[ky].astype(jnp.bfloat16),
                    preferred_element_type=jnp.float32,
                )
        return acc + b_ref[...]

    x = x_ref[...].astype(jnp.float32)
    y = jnp.maximum(conv3x3(x, w1_ref, b1_ref), 0.0)   # Conv1 + bias + ReLU
    z = conv3x3(y, w2_ref, b2_ref)                     # Conv2 + bias
    o_ref[...] = (x + z).astype(o_ref.dtype)           # residual add


def _tap_weights_blockdiag(w_oihw, n_batch):
    """(C, C, 3, 3) OIHW -> (9, N*C, N*C) bf16 block-diagonal tap weights.

    Tap index t = 3*ky + kx; diagonal block i of tap t is w[:, :, ky, kx].
    """
    c = w_oihw.shape[0]
    w_taps = jnp.transpose(w_oihw, (2, 3, 0, 1)).reshape(9, c, c)
    eye = jnp.eye(n_batch, dtype=w_oihw.dtype)
    w_bd = jax.vmap(lambda m: jnp.kron(eye, m))(w_taps)
    return w_bd.astype(jnp.bfloat16)


def _bias_rows(b, n_batch):
    """(C,) -> (N*C, 1) float32; row (n, c) gets b[c]."""
    return jnp.tile(b, n_batch).reshape(n_batch * b.shape[0], 1).astype(jnp.float32)


def resblock_forward(x_nchw, w1, b1, w2, b2):
    """ResBlock forward (norm=False). x_nchw: (N, C, H, W) f32 -> (N, C, H, W) f32."""
    n, c, h, w = x_nchw.shape
    assert h >= 2 and w >= 2, "ReflectionPad2d(1) requires H >= 2 and W >= 2"
    r, hw = n * c, h * w

    kernel = functools.partial(_resblock_kernel, h=h, w=w)
    vmem = pl.BlockSpec(memory_space=pltpu.MemorySpace.VMEM)

    out2d = pl.pallas_call(
        kernel,
        out_shape=jax.ShapeDtypeStruct((r, hw), x_nchw.dtype),
        in_specs=[vmem, vmem, vmem, vmem, vmem],
        out_specs=vmem,
    )(
        x_nchw.reshape(r, hw),            # free, layout-preserving reshape
        _tap_weights_blockdiag(w1, n),
        _bias_rows(b1, n),
        _tap_weights_blockdiag(w2, n),
        _bias_rows(b2, n),
    )
    return out2d.reshape(n, c, h, w)      # free reshape back to NCHW


def _reference_resblock(x_nchw, w1, b1, w2, b2):
    pad = lambda t: jnp.pad(t, ((0, 0), (0, 0), (1, 1), (1, 1)), mode="reflect")
    conv = lambda t, w, b: jax.lax.conv_general_dilated(
        t, w, (1, 1), "VALID",
        dimension_numbers=("NCHW", "OIHW", "NCHW")) + b[None, :, None, None]
    y = jnp.maximum(conv(pad(x_nchw), w1, b1), 0.0)
    return x_nchw + conv(pad(y), w2, b2)


if __name__ == "__main__":
    # Small deterministic setup consistent with the module: in_features = C.
    N, C, H, W = 2, 4, 16, 16
    key = jax.random.PRNGKey(0)
    kx, kw1, kb1, kw2, kb2 = jax.random.split(key, 5)

    x = jax.random.normal(kx, (N, C, H, W), dtype=jnp.float32)
    # nn.Conv2d(in_features, in_features, 3): weight (C, C, 3, 3), bias (C,)
    w1 = jax.random.normal(kw1, (C, C, 3, 3), dtype=jnp.float32) * 0.1
    b1 = jax.random.normal(kb1, (C,), dtype=jnp.float32) * 0.1
    w2 = jax.random.normal(kw2, (C, C, 3, 3), dtype=jnp.float32) * 0.1
    b2 = jax.random.normal(kb2, (C,), dtype=jnp.float32) * 0.1

    fwd = jax.jit(resblock_forward)
    out = jax.block_until_ready(fwd(x, w1, b1, w2, b2))
    ref = jax.block_until_ready(_reference_resblock(x, w1, b1, w2, b2))

    assert out.shape == (N, C, H, W)
    # bf16 MXU operands (f32 accumulation) -> loosened tolerance vs the f32 reference.
    max_err = float(jnp.max(jnp.abs(out - ref)))
    assert jnp.allclose(out, ref, atol=5e-2, rtol=5e-2), (
        f"mismatch vs reference, max abs err = {max_err}")

    print("KERNEL_OK")
</pallas_src>

<mosaic_0001>
module attributes {stable_mosaic.version = 11 : i64} {
  func.func @_resblock_kernel(%arg0: memref<8x256xf32, #tpu.memory_space<vmem>>, %arg1: memref<9x8x8xbf16, #tpu.memory_space<vmem>>, %arg2: memref<8x1xf32, #tpu.memory_space<vmem>>, %arg3: memref<9x8x8xbf16, #tpu.memory_space<vmem>>, %arg4: memref<8x1xf32, #tpu.memory_space<vmem>>, %arg5: memref<8x256xf32, #tpu.memory_space<vmem>>) attributes {dimension_semantics = [], scalar_prefetch = 0 : i64, scratch_operands = 0 : i64, tpu.core_type = #tpu.core_type<tc>} {
    %0 = tpu.iota {dimensions = array<i32: 1>} : vector<8x256xi32>
    %c16_i32 = arith.constant 16 : i32
    %c0_i32 = arith.constant 0 : i32
    %1 = arith.cmpi eq, %c16_i32, %c0_i32 : i32
    %c1_i32 = arith.constant 1 : i32
    %2 = arith.select %1, %c1_i32, %c16_i32 : i32
    %3 = vector.broadcast %2 : i32 to vector<8x256xi32>
    %4 = arith.remsi %0, %3 : vector<8x256xi32>
    %c0_i32_0 = arith.constant 0 : i32
    %5 = vector.broadcast %c0_i32_0 : i32 to vector<8x256xi32>
    %6 = arith.cmpi ne, %4, %5 : vector<8x256xi32>
    %c0_i32_1 = arith.constant 0 : i32
    %7 = vector.broadcast %c0_i32_1 : i32 to vector<8x256xi32>
    %8 = arith.cmpi slt, %4, %7 : vector<8x256xi32>
    %c0_i32_2 = arith.constant 0 : i32
    %9 = arith.cmpi slt, %2, %c0_i32_2 : i32
    %10 = vector.broadcast %9 : i1 to vector<8x256xi1>
    %11 = vector.broadcast %10 : vector<8x256xi1> to vector<8x256xi1>
    %12 = arith.xori %8, %11 : vector<8x256xi1>
    %13 = arith.andi %12, %6 : vector<8x256xi1>
    %14 = vector.broadcast %2 : i32 to vector<8x256xi32>
    %15 = arith.addi %4, %14 : vector<8x256xi32>
    %16 = arith.select %13, %15, %4 : vector<8x256xi1>, vector<8x256xi32>
    %c0_i32_3 = arith.constant 0 : i32
    %17 = vector.broadcast %c0_i32_3 : i32 to vector<8x256xi32>
    %18 = arith.cmpi eq, %16, %17 : vector<8x256xi32>
    %c15_i32 = arith.constant 15 : i32
    %19 = vector.broadcast %c15_i32 : i32 to vector<8x256xi32>
    %20 = arith.cmpi eq, %16, %19 : vector<8x256xi32>
    %c16_i32_4 = arith.constant 16 : i32
    %21 = vector.broadcast %c16_i32_4 : i32 to vector<8x256xi32>
    %22 = arith.cmpi slt, %0, %21 : vector<8x256xi32>
    %c240_i32 = arith.constant 240 : i32
    %23 = vector.broadcast %c240_i32 : i32 to vector<8x256xi32>
    %24 = arith.cmpi sge, %0, %23 : vector<8x256xi32>
    %c0 = arith.constant 0 : index
    %c0_5 = arith.constant 0 : index
    %25 = vector.load %arg0[%c0, %c0_5] : memref<8x256xf32, #tpu.memory_space<vmem>>, vector<8x256xf32>
    %c1_i32_6 = arith.constant 1 : i32
    %26 = tpu.dynamic_rotate %25 by %c1_i32_6 dim 1 : vector<8x256xf32>, i32 -> vector<8x256xf32>
    %c255_i32 = arith.constant 255 : i32
    %27 = tpu.dynamic_rotate %25 by %c255_i32 dim 1 : vector<8x256xf32>, i32 -> vector<8x256xf32>
    %28 = arith.select %18, %27, %26 : vector<8x256xi1>, vector<8x256xf32>
    %29 = arith.select %20, %26, %27 : vector<8x256xi1>, vector<8x256xf32>
    %cst = arith.constant 0.000000e+00 : f32
    %30 = vector.broadcast %cst : f32 to vector<8x256xf32>
    %c16_i32_7 = arith.constant 16 : i32
    %31 = tpu.dynamic_rotate %28 by %c16_i32_7 dim 1 : vector<8x256xf32>, i32 -> vector<8x256xf32>
    %c240_i32_8 = arith.constant 240 : i32
    %32 = tpu.dynamic_rotate %28 by %c240_i32_8 dim 1 : vector<8x256xf32>, i32 -> vector<8x256xf32>
    %33 = arith.select %22, %32, %31 : vector<8x256xi1>, vector<8x256xf32>
    %34 = arith.select %24, %31, %32 : vector<8x256xi1>, vector<8x256xf32>
    %c0_9 = arith.constant 0 : index
    %c0_10 = arith.constant 0 : index
    %c0_11 = arith.constant 0 : index
    %35 = vector.load %arg1[%c0_9, %c0_10, %c0_11] : memref<9x8x8xbf16, #tpu.memory_space<vmem>>, vector<1x8x8xbf16>
    %36 = vector.shape_cast %35 : vector<1x8x8xbf16> to vector<8x8xbf16>
    %37 = arith.truncf %33 : vector<8x256xf32> to vector<8x256xbf16>
    %cst_12 = arith.constant dense<0.000000e+00> : vector<8x256xf32>
    %38 = tpu.matmul %36, %37, %cst_12 {dimension_numbers = #tpu.dot_dimension_numbers<[1], [0], [0], [1], [0, 0, 1, 1], [], []>} : vector<8x8xbf16>, vector<8x256xbf16>, vector<8x256xf32> -> vector<8x256xf32>
    %39 = arith.addf %30, %38 : vector<8x256xf32>
    %c3 = arith.constant 3 : index
    %c0_13 = arith.constant 0 : index
    %c0_14 = arith.constant 0 : index
    %40 = vector.load %arg1[%c3, %c0_13, %c0_14] : memref<9x8x8xbf16, #tpu.memory_space<vmem>>, vector<1x8x8xbf16>
    %41 = vector.shape_cast %40 : vector<1x8x8xbf16> to vector<8x8xbf16>
    %42 = arith.truncf %28 : vector<8x256xf32> to vector<8x256xbf16>
    %cst_15 = arith.constant dense<0.000000e+00> : vector<8x256xf32>
    %43 = tpu.matmul %41, %42, %cst_15 {dimension_numbers = #tpu.dot_dimension_numbers<[1], [0], [0], [1], [0, 0, 1, 1], [], []>} : vector<8x8xbf16>, vector<8x256xbf16>, vector<8x256xf32> -> vector<8x256xf32>
    %44 = arith.addf %39, %43 : vector<8x256xf32>
    %c6 = arith.constant 6 : index
    %c0_16 = arith.constant 0 : index
    %c0_17 = arith.constant 0 : index
    %45 = vector.load %arg1[%c6, %c0_16, %c0_17] : memref<9x8x8xbf16, #tpu.memory_space<vmem>>, vector<1x8x8xbf16>
    %46 = vector.shape_cast %45 : vector<1x8x8xbf16> to vector<8x8xbf16>
    %47 = arith.truncf %34 : vector<8x256xf32> to vector<8x256xbf16>
    %cst_18 = arith.constant dense<0.000000e+00> : vector<8x256xf32>
    %48 = tpu.matmul %46, %47, %cst_18 {dimension_numbers = #tpu.dot_dimension_numbers<[1], [0], [0], [1], [0, 0, 1, 1], [], []>} : vector<8x8xbf16>, vector<8x256xbf16>, vector<8x256xf32> -> vector<8x256xf32>
    %49 = arith.addf %44, %48 : vector<8x256xf32>
    %c16_i32_19 = arith.constant 16 : i32
    %50 = tpu.dynamic_rotate %25 by %c16_i32_19 dim 1 : vector<8x256xf32>, i32 -> vector<8x256xf32>
    %c240_i32_20 = arith.constant 240 : i32
    %51 = tpu.dynamic_rotate %25 by %c240_i32_20 dim 1 : vector<8x256xf32>, i32 -> vector<8x256xf32>
    %52 = arith.select %22, %51, %50 : vector<8x256xi1>, vector<8x256xf32>
    %53 = arith.select %24, %50, %51 : vector<8x256xi1>, vector<8x256xf32>
    %c1 = arith.constant 1 : index
    %c0_21 = arith.constant 0 : index
    %c0_22 = arith.constant 0 : index
    %54 = vector.load %arg1[%c1, %c0_21, %c0_22] : memref<9x8x8xbf16, #tpu.memory_space<vmem>>, vector<1x8x8xbf16>
    %55 = vector.shape_cast %54 : vector<1x8x8xbf16> to vector<8x8xbf16>
    %56 = arith.truncf %52 : vector<8x256xf32> to vector<8x256xbf16>
    %cst_23 = arith.constant dense<0.000000e+00> : vector<8x256xf32>
    %57 = tpu.matmul %55, %56, %cst_23 {dimension_numbers = #tpu.dot_dimension_numbers<[1], [0], [0], [1], [0, 0, 1, 1], [], []>} : vector<8x8xbf16>, vector<8x256xbf16>, vector<8x256xf32> -> vector<8x256xf32>
    %58 = arith.addf %49, %57 : vector<8x256xf32>
    %c4 = arith.constant 4 : index
    %c0_24 = arith.constant 0 : index
    %c0_25 = arith.constant 0 : index
    %59 = vector.load %arg1[%c4, %c0_24, %c0_25] : memref<9x8x8xbf16, #tpu.memory_space<vmem>>, vector<1x8x8xbf16>
    %60 = vector.shape_cast %59 : vector<1x8x8xbf16> to vector<8x8xbf16>
    %61 = arith.truncf %25 : vector<8x256xf32> to vector<8x256xbf16>
    %cst_26 = arith.constant dense<0.000000e+00> : vector<8x256xf32>
    %62 = tpu.matmul %60, %61, %cst_26 {dimension_numbers = #tpu.dot_dimension_numbers<[1], [0], [0], [1], [0, 0, 1, 1], [], []>} : vector<8x8xbf16>, vector<8x256xbf16>, vector<8x256xf32> -> vector<8x256xf32>
    %63 = arith.addf %58, %62 : vector<8x256xf32>
    %c7 = arith.constant 7 : index
    %c0_27 = arith.constant 0 : index
    %c0_28 = arith.constant 0 : index
    %64 = vector.load %arg1[%c7, %c0_27, %c0_28] : memref<9x8x8xbf16, #tpu.memory_space<vmem>>, vector<1x8x8xbf16>
    %65 = vector.shape_cast %64 : vector<1x8x8xbf16> to vector<8x8xbf16>
    %66 = arith.truncf %53 : vector<8x256xf32> to vector<8x256xbf16>
    %cst_29 = arith.constant dense<0.000000e+00> : vector<8x256xf32>
    %67 = tpu.matmul %65, %66, %cst_29 {dimension_numbers = #tpu.dot_dimension_numbers<[1], [0], [0], [1], [0, 0, 1, 1], [], []>} : vector<8x8xbf16>, vector<8x256xbf16>, vector<8x256xf32> -> vector<8x256xf32>
    %68 = arith.addf %63, %67 : vector<8x256xf32>
    %c16_i32_30 = arith.constant 16 : i32
    %69 = tpu.dynamic_rotate %29 by %c16_i32_30 dim 1 : vector<8x256xf32>, i32 -> vector<8x256xf32>
    %c240_i32_31 = arith.constant 240 : i32
    %70 = tpu.dynamic_rotate %29 by %c240_i32_31 dim 1 : vector<8x256xf32>, i32 -> vector<8x256xf32>
    %71 = arith.select %22, %70, %69 : vector<8x256xi1>, vector<8x256xf32>
    %72 = arith.select %24, %69, %70 : vector<8x256xi1>, vector<8x256xf32>
    %c2 = arith.constant 2 : index
    %c0_32 = arith.constant 0 : index
    %c0_33 = arith.constant 0 : index
    %73 = vector.load %arg1[%c2, %c0_32, %c0_33] : memref<9x8x8xbf16, #tpu.memory_space<vmem>>, vector<1x8x8xbf16>
    %74 = vector.shape_cast %73 : vector<1x8x8xbf16> to vector<8x8xbf16>
    %75 = arith.truncf %71 : vector<8x256xf32> to vector<8x256xbf16>
    %cst_34 = arith.constant dense<0.000000e+00> : vector<8x256xf32>
    %76 = tpu.matmul %74, %75, %cst_34 {dimension_numbers = #tpu.dot_dimension_numbers<[1], [0], [0], [1], [0, 0, 1, 1], [], []>} : vector<8x8xbf16>, vector<8x256xbf16>, vector<8x256xf32> -> vector<8x256xf32>
    %77 = arith.addf %68, %76 : vector<8x256xf32>
    %c5 = arith.constant 5 : index
    %c0_35 = arith.constant 0 : index
    %c0_36 = arith.constant 0 : index
    %78 = vector.load %arg1[%c5, %c0_35, %c0_36] : memref<9x8x8xbf16, #tpu.memory_space<vmem>>, vector<1x8x8xbf16>
    %79 = vector.shape_cast %78 : vector<1x8x8xbf16> to vector<8x8xbf16>
    %80 = arith.truncf %29 : vector<8x256xf32> to vector<8x256xbf16>
    %cst_37 = arith.constant dense<0.000000e+00> : vector<8x256xf32>
    %81 = tpu.matmul %79, %80, %cst_37 {dimension_numbers = #tpu.dot_dimension_numbers<[1], [0], [0], [1], [0, 0, 1, 1], [], []>} : vector<8x8xbf16>, vector<8x256xbf16>, vector<8x256xf32> -> vector<8x256xf32>
    %82 = arith.addf %77, %81 : vector<8x256xf32>
    %c8 = arith.constant 8 : index
    %c0_38 = arith.constant 0 : index
    %c0_39 = arith.constant 0 : index
    %83 = vector.load %arg1[%c8, %c0_38, %c0_39] : memref<9x8x8xbf16, #tpu.memory_space<vmem>>, vector<1x8x8xbf16>
    %84 = vector.shape_cast %83 : vector<1x8x8xbf16> to vector<8x8xbf16>
    %85 = arith.truncf %72 : vector<8x256xf32> to vector<8x256xbf16>
    %cst_40 = arith.constant dense<0.000000e+00> : vector<8x256xf32>
    %86 = tpu.matmul %84, %85, %cst_40 {dimension_numbers = #tpu.dot_dimension_numbers<[1], [0], [0], [1], [0, 0, 1, 1], [], []>} : vector<8x8xbf16>, vector<8x256xbf16>, vector<8x256xf32> -> vector<8x256xf32>
    %87 = arith.addf %82, %86 : vector<8x256xf32>
    %c0_41 = arith.constant 0 : index
    %c0_42 = arith.constant 0 : index
    %88 = vector.load %arg2[%c0_41, %c0_42] : memref<8x1xf32, #tpu.memory_space<vmem>>, vector<8x1xf32>
    %89 = vector.broadcast %88 : vector<8x1xf32> to vector<8x256xf32>
    %90 = arith.addf %87, %89 : vector<8x256xf32>
    %cst_43 = arith.constant 0.000000e+00 : f32
    %91 = vector.broadcast %cst_43 : f32 to vector<8x256xf32>
    %92 = arith.maximumf %90, %91 : vector<8x256xf32>
    %c1_i32_44 = arith.constant 1 : i32
    %93 = tpu.dynamic_rotate %92 by %c1_i32_44 dim 1 : vector<8x256xf32>, i32 -> vector<8x256xf32>
    %c255_i32_45 = arith.constant 255 : i32
    %94 = tpu.dynamic_rotate %92 by %c255_i32_45 dim 1 : vector<8x256xf32>, i32 -> vector<8x256xf32>
    %95 = arith.select %18, %94, %93 : vector<8x256xi1>, vector<8x256xf32>
    %96 = arith.select %20, %93, %94 : vector<8x256xi1>, vector<8x256xf32>
    %cst_46 = arith.constant 0.000000e+00 : f32
    %97 = vector.broadcast %cst_46 : f32 to vector<8x256xf32>
    %c16_i32_47 = arith.constant 16 : i32
    %98 = tpu.dynamic_rotate %95 by %c16_i32_47 dim 1 : vector<8x256xf32>, i32 -> vector<8x256xf32>
    %c240_i32_48 = arith.constant 240 : i32
    %99 = tpu.dynamic_rotate %95 by %c240_i32_48 dim 1 : vector<8x256xf32>, i32 -> vector<8x256xf32>
    %100 = arith.select %22, %99, %98 : vector<8x256xi1>, vector<8x256xf32>
    %101 = arith.select %24, %98, %99 : vector<8x256xi1>, vector<8x256xf32>
    %c0_49 = arith.constant 0 : index
    %c0_50 = arith.constant 0 : index
    %c0_51 = arith.constant 0 : index
    %102 = vector.load %arg3[%c0_49, %c0_50, %c0_51] : memref<9x8x8xbf16, #tpu.memory_space<vmem>>, vector<1x8x8xbf16>
    %103 = vector.shape_cast %102 : vector<1x8x8xbf16> to vector<8x8xbf16>
    %104 = arith.truncf %100 : vector<8x256xf32> to vector<8x256xbf16>
    %cst_52 = arith.constant dense<0.000000e+00> : vector<8x256xf32>
    %105 = tpu.matmul %103, %104, %cst_52 {dimension_numbers = #tpu.dot_dimension_numbers<[1], [0], [0], [1], [0, 0, 1, 1], [], []>} : vector<8x8xbf16>, vector<8x256xbf16>, vector<8x256xf32> -> vector<8x256xf32>
    %106 = arith.addf %97, %105 : vector<8x256xf32>
    %c3_53 = arith.constant 3 : index
    %c0_54 = arith.constant 0 : index
    %c0_55 = arith.constant 0 : index
    %107 = vector.load %arg3[%c3_53, %c0_54, %c0_55] : memref<9x8x8xbf16, #tpu.memory_space<vmem>>, vector<1x8x8xbf16>
    %108 = vector.shape_cast %107 : vector<1x8x8xbf16> to vector<8x8xbf16>
    %109 = arith.truncf %95 : vector<8x256xf32> to vector<8x256xbf16>
    %cst_56 = arith.constant dense<0.000000e+00> : vector<8x256xf32>
    %110 = tpu.matmul %108, %109, %cst_56 {dimension_numbers = #tpu.dot_dimension_numbers<[1], [0], [0], [1], [0, 0, 1, 1], [], []>} : vector<8x8xbf16>, vector<8x256xbf16>, vector<8x256xf32> -> vector<8x256xf32>
    %111 = arith.addf %106, %110 : vector<8x256xf32>
    %c6_57 = arith.constant 6 : index
    %c0_58 = arith.constant 0 : index
    %c0_59 = arith.constant 0 : index
    %112 = vector.load %arg3[%c6_57, %c0_58, %c0_59] : memref<9x8x8xbf16, #tpu.memory_space<vmem>>, vector<1x8x8xbf16>
    %113 = vector.shape_cast %112 : vector<1x8x8xbf16> to vector<8x8xbf16>
    %114 = arith.truncf %101 : vector<8x256xf32> to vector<8x256xbf16>
    %cst_60 = arith.constant dense<0.000000e+00> : vector<8x256xf32>
    %115 = tpu.matmul %113, %114, %cst_60 {dimension_numbers = #tpu.dot_dimension_numbers<[1], [0], [0], [1], [0, 0, 1, 1], [], []>} : vector<8x8xbf16>, vector<8x256xbf16>, vector<8x256xf32> -> vector<8x256xf32>
    %116 = arith.addf %111, %115 : vector<8x256xf32>
    %c16_i32_61 = arith.constant 16 : i32
    %117 = tpu.dynamic_rotate %92 by %c16_i32_61 dim 1 : vector<8x256xf32>, i32 -> vector<8x256xf32>
    %c240_i32_62 = arith.constant 240 : i32
    %118 = tpu.dynamic_rotate %92 by %c240_i32_62 dim 1 : vector<8x256xf32>, i32 -> vector<8x256xf32>
    %119 = arith.select %22, %118, %117 : vector<8x256xi1>, vector<8x256xf32>
    %120 = arith.select %24, %117, %118 : vector<8x256xi1>, vector<8x256xf32>
    %c1_63 = arith.constant 1 : index
    %c0_64 = arith.constant 0 : index
    %c0_65 = arith.constant 0 : index
    %121 = vector.load %arg3[%c1_63, %c0_64, %c0_65] : memref<9x8x8xbf16, #tpu.memory_space<vmem>>, vector<1x8x8xbf16>
    %122 = vector.shape_cast %121 : vector<1x8x8xbf16> to vector<8x8xbf16>
    %123 = arith.truncf %119 : vector<8x256xf32> to vector<8x256xbf16>
    %cst_66 = arith.constant dense<0.000000e+00> : vector<8x256xf32>
    %124 = tpu.matmul %122, %123, %cst_66 {dimension_numbers = #tpu.dot_dimension_numbers<[1], [0], [0], [1], [0, 0, 1, 1], [], []>} : vector<8x8xbf16>, vector<8x256xbf16>, vector<8x256xf32> -> vector<8x256xf32>
    %125 = arith.addf %116, %124 : vector<8x256xf32>
    %c4_67 = arith.constant 4 : index
    %c0_68 = arith.constant 0 : index
    %c0_69 = arith.constant 0 : index
    %126 = vector.load %arg3[%c4_67, %c0_68, %c0_69] : memref<9x8x8xbf16, #tpu.memory_space<vmem>>, vector<1x8x8xbf16>
    %127 = vector.shape_cast %126 : vector<1x8x8xbf16> to vector<8x8xbf16>
    %128 = arith.truncf %92 : vector<8x256xf32> to vector<8x256xbf16>
    %cst_70 = arith.constant dense<0.000000e+00> : vector<8x256xf32>
    %129 = tpu.matmul %127, %128, %cst_70 {dimension_numbers = #tpu.dot_dimension_numbers<[1], [0], [0], [1], [0, 0, 1, 1], [], []>} : vector<8x8xbf16>, vector<8x256xbf16>, vector<8x256xf32> -> vector<8x256xf32>
    %130 = arith.addf %125, %129 : vector<8x256xf32>
    %c7_71 = arith.constant 7 : index
    %c0_72 = arith.constant 0 : index
    %c0_73 = arith.constant 0 : index
    %131 = vector.load %arg3[%c7_71, %c0_72, %c0_73] : memref<9x8x8xbf16, #tpu.memory_space<vmem>>, vector<1x8x8xbf16>
    %132 = vector.shape_cast %131 : vector<1x8x8xbf16> to vector<8x8xbf16>
    %133 = arith.truncf %120 : vector<8x256xf32> to vector<8x256xbf16>
    %cst_74 = arith.constant dense<0.000000e+00> : vector<8x256xf32>
    %134 = tpu.matmul %132, %133, %cst_74 {dimension_numbers = #tpu.dot_dimension_numbers<[1], [0], [0], [1], [0, 0, 1, 1], [], []>} : vector<8x8xbf16>, vector<8x256xbf16>, vector<8x256xf32> -> vector<8x256xf32>
    %135 = arith.addf %130, %134 : vector<8x256xf32>
    %c16_i32_75 = arith.constant 16 : i32
    %136 = tpu.dynamic_rotate %96 by %c16_i32_75 dim 1 : vector<8x256xf32>, i32 -> vector<8x256xf32>
    %c240_i32_76 = arith.constant 240 : i32
    %137 = tpu.dynamic_rotate %96 by %c240_i32_76 dim 1 : vector<8x256xf32>, i32 -> vector<8x256xf32>
    %138 = arith.select %22, %137, %136 : vector<8x256xi1>, vector<8x256xf32>
    %139 = arith.select %24, %136, %137 : vector<8x256xi1>, vector<8x256xf32>
    %c2_77 = arith.constant 2 : index
    %c0_78 = arith.constant 0 : index
    %c0_79 = arith.constant 0 : index
    %140 = vector.load %arg3[%c2_77, %c0_78, %c0_79] : memref<9x8x8xbf16, #tpu.memory_space<vmem>>, vector<1x8x8xbf16>
    %141 = vector.shape_cast %140 : vector<1x8x8xbf16> to vector<8x8xbf16>
    %142 = arith.truncf %138 : vector<8x256xf32> to vector<8x256xbf16>
    %cst_80 = arith.constant dense<0.000000e+00> : vector<8x256xf32>
    %143 = tpu.matmul %141, %142, %cst_80 {dimension_numbers = #tpu.dot_dimension_numbers<[1], [0], [0], [1], [0, 0, 1, 1], [], []>} : vector<8x8xbf16>, vector<8x256xbf16>, vector<8x256xf32> -> vector<8x256xf32>
    %144 = arith.addf %135, %143 : vector<8x256xf32>
    %c5_81 = arith.constant 5 : index
    %c0_82 = arith.constant 0 : index
    %c0_83 = arith.constant 0 : index
    %145 = vector.load %arg3[%c5_81, %c0_82, %c0_83] : memref<9x8x8xbf16, #tpu.memory_space<vmem>>, vector<1x8x8xbf16>
    %146 = vector.shape_cast %145 : vector<1x8x8xbf16> to vector<8x8xbf16>
    %147 = arith.truncf %96 : vector<8x256xf32> to vector<8x256xbf16>
    %cst_84 = arith.constant dense<0.000000e+00> : vector<8x256xf32>
    %148 = tpu.matmul %146, %147, %cst_84 {dimension_numbers = #tpu.dot_dimension_numbers<[1], [0], [0], [1], [0, 0, 1, 1], [], []>} : vector<8x8xbf16>, vector<8x256xbf16>, vector<8x256xf32> -> vector<8x256xf32>
    %149 = arith.addf %144, %148 : vector<8x256xf32>
    %c8_85 = arith.constant 8 : index
    %c0_86 = arith.constant 0 : index
    %c0_87 = arith.constant 0 : index
    %150 = vector.load %arg3[%c8_85, %c0_86, %c0_87] : memref<9x8x8xbf16, #tpu.memory_space<vmem>>, vector<1x8x8xbf16>
    %151 = vector.shape_cast %150 : vector<1x8x8xbf16> to vector<8x8xbf16>
    %152 = arith.truncf %139 : vector<8x256xf32> to vector<8x256xbf16>
    %cst_88 = arith.constant dense<0.000000e+00> : vector<8x256xf32>
    %153 = tpu.matmul %151, %152, %cst_88 {dimension_numbers = #tpu.dot_dimension_numbers<[1], [0], [0], [1], [0, 0, 1, 1], [], []>} : vector<8x8xbf16>, vector<8x256xbf16>, vector<8x256xf32> -> vector<8x256xf32>
    %154 = arith.addf %149, %153 : vector<8x256xf32>
    %c0_89 = arith.constant 0 : index
    %c0_90 = arith.constant 0 : index
    %155 = vector.load %arg4[%c0_89, %c0_90] : memref<8x1xf32, #tpu.memory_space<vmem>>, vector<8x1xf32>
    %156 = vector.broadcast %155 : vector<8x1xf32> to vector<8x256xf32>
    %157 = arith.addf %154, %156 : vector<8x256xf32>
    %158 = arith.addf %25, %157 : vector<8x256xf32>
    %c0_91 = arith.constant 0 : index
    %c0_92 = arith.constant 0 : index
    %159 = vector.load %arg5[%c0_91, %c0_92] : memref<8x256xf32, #tpu.memory_space<vmem>>, vector<8x256xf32>
    tpu.vector_store %arg5[%c0_91, %c0_92], %158 {strides = array<i32>} : memref<8x256xf32, #tpu.memory_space<vmem>>, vector<8x256xf32>,
    return
  }
}

</mosaic_0001>

<llo_original>
// kernel: tile.13
$region0: #{tile.13}
  #allocation0 [shape = 's32[1]{0}', space=sflag, size = 0x4, scoped, tag = 'scoped memory for tile.13']
  %s0 = inlined_call_operand.vmem [shape: f32[4], index: 0, kind: input, shape index: {}]
  %s1 = inlined_call_operand.vmem [shape: f32[2,4], index: 1, kind: output, shape index: {}]
  // Predicated region
  $region2: #{tile.13} parent=0 // pred_check
    _
  $region3: #{tile.13} parent=0 // pred_check_branch
    %3 = sbr.rel (0) target = $region5
  $region4: #{tile.13} parent=0 // pred_region
    _
  $region5: #{tile.13} parent=0 // pred_fallthru
    _
  %v4 = vld [vmem:[%s0] ss:$0 sm:$0xff]
  %5 = vst [vmem:[%s1] sm:$0x3] %v4

// kernel: tile.0
$region0: #{tile.0}
  %s0 = inlined_call_operand.vmem [shape: f32[2,4], index: 0, kind: input, shape index: {}]
  %s1 = inlined_call_operand.vmem [shape: f32[8,1], index: 1, kind: output, shape index: {}]
  $region1: #{tile.0} parent=0
    #allocation0 [shape = 'u8[4096]{0}', space=vmem, size = 0x1000, scoped, tag = 'scoped mem for input reshape']
    %s3 = sshllo.u32 0, 2
    %v4 = vld [vmem:[%s0] sm:%s3]
    %5 = vst [vmem:[#allocation0] sm:%s3] %v4
    %v6 = vld [vmem:[#allocation0] sm:$0x3]
    %vm7 = vcmask 7168
    %8 = vst.msk [vmem:[%s1] ss:$4 sm:$0x3] %vm7, %v6
    %v9 = vld [vmem:[#allocation0] sm:$0x3]
    %10 = vrot.lane.b32.xlu0 %v9, 127
    %v11 = vpop.permute.xlu0 %10
    %vm12 = vcmask 7168
    %s13 = scalar_lea.vmem %s1, 1
    %14 = vst.msk [vmem:[%s13] ss:$4 sm:$0x3] %vm12, %v11
    %v15 = vld [vmem:[#allocation0] sm:$0x3]
    %16 = vrot.lane.b32.xlu0 %v15, 126
    %v17 = vpop.permute.xlu0 %16
    %vm18 = vcmask 7168
    %s19 = scalar_lea.vmem %s1, 2
    %20 = vst.msk [vmem:[%s19] ss:$4 sm:$0x3] %vm18, %v17
    %v21 = vld [vmem:[#allocation0] sm:$0x3]
    %22 = vrot.lane.b32.xlu0 %v21, 125
    %v23 = vpop.permute.xlu0 %22
    %vm24 = vcmask 7168
    %s25 = scalar_lea.vmem %s1, 3
    %26 = vst.msk [vmem:[%s25] ss:$4 sm:$0x3] %vm24, %v23

// kernel: resblock_forward.1
$region0: #{resblock_forward.1}
  #allocation0 [shape = 'u32[]', space=smem, size = 0x4, offset = 0x4, fixed_abs, tag = 'smem constant byte address 0x4 - core index']
  #allocation1 [shape = 'u32[144,128]{1,0:T(1,128)}', space=vmem, size = 0x12000, scoped, tag = 'internal scratch']
  %s0 = inlined_call_operand.vmem [shape: f32[8,256], index: 0, kind: input, shape index: {}]
  %s1 = inlined_call_operand.vmem [shape: bf16[9,8,8], index: 1, kind: input, shape index: {}]
  %s2 = inlined_call_operand.vmem [shape: f32[8,1], index: 2, kind: input, shape index: {}]
  %s3 = inlined_call_operand.vmem [shape: bf16[9,8,8], index: 3, kind: input, shape index: {}]
  %s4 = inlined_call_operand.vmem [shape: f32[8,1], index: 4, kind: input, shape index: {}]
  %s5 = inlined_call_operand.vmem [shape: f32[8,256], index: 5, kind: output, shape index: {}]
  %s6 = sld [smem:[#allocation0]]
  $region30: #{resblock_forward.1} parent=0
    _
  %s8 = ssub.s32 1, %s6
  %s9 = scalar_select 0, %s8, %s6
  // Predicated region
  $region2: #{resblock_forward.1} parent=0 // pred_check
    _
  $region3: #{resblock_forward.1} parent=0 // pred_check_branch
    %11 = sbr.rel (0) target = $region5
  $region4: #{resblock_forward.1} parent=0 // pred_region
    _
  $region5: #{resblock_forward.1} parent=0 // pred_fallthru
    _
  // Predicated region
  $region6: #{resblock_forward.1} parent=0 // pred_check
    _
  $region7: #{resblock_forward.1} parent=0 // pred_check_branch
    %13 = sbr.rel (0) target = $region9
  $region8: #{resblock_forward.1} parent=0 // pred_region
    _
  $region9: #{resblock_forward.1} parent=0 // pred_fallthru
    _
  // Predicated region
  $region10: #{resblock_forward.1} parent=0 // pred_check
    _
  $region11: #{resblock_forward.1} parent=0 // pred_check_branch
    %15 = sbr.rel (0) target = $region13
  $region12: #{resblock_forward.1} parent=0 // pred_region
    _
  $region13: #{resblock_forward.1} parent=0 // pred_fallthru
    _
  // Predicated region
  $region14: #{resblock_forward.1} parent=0 // pred_check
    _
  $region15: #{resblock_forward.1} parent=0 // pred_check_branch
    %17 = sbr.rel (0) target = $region17
  $region16: #{resblock_forward.1} parent=0 // pred_region
    _
  $region17: #{resblock_forward.1} parent=0 // pred_fallthru
    _
  // Predicated region
  $region18: #{resblock_forward.1} parent=0 // pred_check
    _
  $region19: #{resblock_forward.1} parent=0 // pred_check_branch
    %19 = sbr.rel (0) target = $region21
  $region20: #{resblock_forward.1} parent=0 // pred_region
    _
  $region21: #{resblock_forward.1} parent=0 // pred_fallthru
    _
  %v21 = vlaneseq
  %v22 = vand.u32 %v21, 127
  %v23 = vadd.s32 %v22, 128
  %vm24 = vcmp.lt.s32.totalorder %v22, 0
  %v25 = vsub.s32 0, %v22
  %v26 = vsel %vm24, %v25, %v22
  %v27 = vshrl.u32 %v26, 4
  %v28 = vand.u32 %v26, 15
  %v29 = vsub.s32 0, %v28
  %v30 = vsel %vm24, %v29, %v28
  %vm31 = vcmp.lt.s32.totalorder %v23, 0
  %v32 = vsub.s32 0, %v23
  %v33 = vsel %vm31, %v32, %v23
  %v34 = vshrl.u32 %v33, 4
  %v35 = vand.u32 %v33, 15
  %v36 = vsub.s32 0, %v35
  %v37 = vsel %vm31, %v36, %v35
  %vm38 = vcmp.ne.s32.totalorder %v30, 0
  %vm39 = vcmp.ne.s32.totalorder %v37, 0
  %vm40 = vcmp.lt.s32.totalorder %v30, 0
  %vm41 = vcmp.lt.s32.totalorder %v37, 0
  %vm42 = vmand %vm40, %vm38
  %vm43 = vmand %vm41, %vm39
  %v44 = vadd.s32 %v30, 16
  %v45 = vadd.s32 %v37, 16
  %v46 = vsel %vm42, %v44, %v30
  %v47 = vsel %vm43, %v45, %v37
  %vm48 = vcmp.eq.s32.totalorder %v46, 0
  %vm49 = vcmp.eq.s32.totalorder %v47, 0
  %vm50 = vcmp.eq.s32.totalorder %v46, 15
  %vm51 = vcmp.eq.s32.totalorder %v47, 15
  %vm52 = vcmp.lt.s32.totalorder %v22, 16
  %vm53 = vcmp.lt.s32.totalorder %v23, 16
  %vm54 = vcmp.ge.s32.totalorder %v22, 240
  %vm55 = vcmp.ge.s32.totalorder %v23, 240
  %v56 = vld [vmem:[%s0] sm:$0xff]
  %v57 = vld [vmem:[%s0 + $0x8] sm:$0xff]
  %58 = vrot.lane.b32.xlu0 %v56, 1
  %v59 = vpop.permute.xlu0 %58
  %60 = vrot.lane.b32.xlu0 %v57, 1
  %v61 = vpop.permute.xlu0 %60
  %vm62 = vcmp.lt.s32.totalorder %v22, 1
  %v63 = vsel %vm62, %v59, %v61
  %v64 = vsel %vm62, %v61, %v59
  %65 = vrot.lane.b32.xlu0 %v56, 127
  %v66 = vpop.permute.xlu0 %65
  %67 = vrot.lane.b32.xlu0 %v57, 127
  %v68 = vpop.permute.xlu0 %67
  %vm69 = vcmp.lt.s32.totalorder %v22, 127
  %v70 = vsel %vm69, %v66, %v68
  %v71 = vsel %vm69, %v68, %v66
  %v72 = vsel %vm48, %v70, %v64
  %v73 = vsel %vm49, %v71, %v63
  %v74 = vsel %vm50, %v64, %v70
  %v75 = vsel %vm51, %v63, %v71
  %76 = vrot.lane.b32.xlu0 %v72, 16
  %v77 = vpop.permute.xlu0 %76
  %78 = vrot.lane.b32.xlu0 %v73, 16
  %v79 = vpop.permute.xlu0 %78
  %v80 = vsel %vm52, %v77, %v79
  %v81 = vsel %vm52, %v79, %v77
  %82 = vrot.lane.b32.xlu0 %v72, 112
  %v83 = vpop.permute.xlu0 %82
  %84 = vrot.lane.b32.xlu0 %v73, 112
  %v85 = vpop.permute.xlu0 %84
  %vm86 = vcmp.lt.s32.totalorder %v22, 112
  %v87 = vsel %vm86, %v83, %v85
  %v88 = vsel %vm86, %v85, %v83
  %v89 = vsel %vm52, %v87, %v81
  %v90 = vsel %vm53, %v88, %v80
  %v91 = vsel %vm54, %v81, %v87
  %v92 = vsel %vm55, %v80, %v88
  %v93 = vld [vmem:[%s1] sm:$0xf]
  %v94 = vpack.c.bf16 %v89, %v89
  %v95 = vpack.c.bf16 %v90, %v90
  %s96 = scalar_lea.vmem %s1, 12
  %v97 = vld [vmem:[%s96] sm:$0xf]
  %v98 = vpack.c.bf16 %v72, %v72
  %v99 = vpack.c.bf16 %v73, %v73
  %vm100 = vcmask 64512
  %v102 = vsel %vm100, %v97, 0
  %vm104 = vcmask 1043456
  %v106 = vsel %vm104, %v98, 0
  %v109 = vsel %vm104, %v99, 0
  %111 = vmatprep.subr.bf16.mxu0 %v109
  %112 = vmatpush1.bf16.msra.mxu0 %v106
  %113 = vmatprep.subr.bf16.mxu0 0
  %114 = vmatpush1.bf16.msra.mxu0 0
  %115 = vmatprep.subr.bf16.mxu0 0
  %116 = vmatpush1.bf16.msra.mxu0 0
  %117 = vmatprep.subr.bf16.mxu0 0
  %118 = vmatpush1.bf16.msra.mxu0 0
  %119 = vmatprep.subr.bf16.mxu0 0
  %120 = vmatpush1.bf16.msra.mxu0 0
  %121 = vmatprep.subr.bf16.mxu0 0
  %122 = vmatpush1.bf16.msra.mxu0 0
  %123 = vmatprep.subr.bf16.mxu0 0
  %124 = vmatpush1.bf16.msra.mxu0 0
  %125 = vmatprep.subr.bf16.mxu0 0
  %126 = vmatpush1.bf16.msra.mxu0 0
  %127 = vmatprep.subr.bf16.mxu0 0
  %128 = vmatpush1.bf16.msra.mxu0 0
  %129 = vmatprep.subr.bf16.mxu0 0
  %130 = vmatpush1.bf16.msra.mxu0 0
  %131 = vmatprep.subr.bf16.mxu0 0
  %132 = vmatpush1.bf16.msra.mxu0 0
  %133 = vmatprep.subr.bf16.mxu0 0
  %134 = vmatpush1.bf16.msra.mxu0 0
  %135 = vmatprep.subr.bf16.mxu0 0
  %136 = vmatpush1.bf16.msra.mxu0 0
  %137 = vmatprep.subr.bf16.mxu0 0
  %138 = vmatpush1.bf16.msra.mxu0 0
  %139 = vmatprep.subr.bf16.mxu0 0
  %140 = vmatpush1.bf16.msra.mxu0 0
  %141 = vmatprep.subr.bf16.mxu0 0
  %142 = vmatpush1.bf16.msra.mxu0 0
  %143 = vmatprep.mubr.bf16.mxu0 0
  %144 = vmatmul.mubr.bf16.gmra.mrb[0].mxu0 %v102
  %v145 = vpop.f32.mrb[0].mxu0
  %v146 = vadd.f32 0.0, %v145
  %v147 = vpop.f32.mrb[0].mxu0
  %v148 = vadd.f32 0.0, %v147
  %v149 = vpop.f32.mrb[0].mxu0
  %v150 = vpop.f32.mrb[0].mxu0
  %151 = vdwg.mxu0
  %v153 = vsel %vm100, %v93, 0
  %v156 = vsel %vm104, %v94, 0
  %v159 = vsel %vm104, %v95, 0
  %161 = vmatprep.subr.bf16.mxu0 %v159
  %162 = vmatpush1.bf16.msra.mxu0 %v156
  %163 = vmatprep.subr.bf16.mxu0 0
  %164 = vmatpush1.bf16.msra.mxu0 0
  %165 = vmatprep.subr.bf16.mxu0 0
  %166 = vmatpush1.bf16.msra.mxu0 0
  %167 = vmatprep.subr.bf16.mxu0 0
  %168 = vmatpush1.bf16.msra.mxu0 0
  %169 = vmatprep.subr.bf16.mxu0 0
  %170 = vmatpush1.bf16.msra.mxu0 0
  %171 = vmatprep.subr.bf16.mxu0 0
  %172 = vmatpush1.bf16.msra.mxu0 0
  %173 = vmatprep.subr.bf16.mxu0 0
  %174 = vmatpush1.bf16.msra.mxu0 0
  %175 = vmatprep.subr.bf16.mxu0 0
  %176 = vmatpush1.bf16.msra.mxu0 0
  %177 = vmatprep.subr.bf16.mxu0 0
  %178 = vmatpush1.bf16.msra.mxu0 0
  %179 = vmatprep.subr.bf16.mxu0 0
  %180 = vmatpush1.bf16.msra.mxu0 0
  %181 = vmatprep.subr.bf16.mxu0 0
  %182 = vmatpush1.bf16.msra.mxu0 0
  %183 = vmatprep.subr.bf16.mxu0 0
  %184 = vmatpush1.bf16.msra.mxu0 0
  %185 = vmatprep.subr.bf16.mxu0 0
  %186 = vmatpush1.bf16.msra.mxu0 0
  %187 = vmatprep.subr.bf16.mxu0 0
  %188 = vmatpush1.bf16.msra.mxu0 0
  %189 = vmatprep.subr.bf16.mxu0 0
  %190 = vmatpush1.bf16.msra.mxu0 0
  %191 = vmatprep.subr.bf16.mxu0 0
  %192 = vmatpush1.bf16.msra.mxu0 0
  %193 = vmatprep.mubr.bf16.mxu0 0
  %194 = vmatmul.mubr.bf16.gmra.mrb[0].mxu0 %v153
  %v195 = vpop.f32.mrb[0].mxu0
  %v196 = vadd.f32 %v146, %v195
  %v197 = vpop.f32.mrb[0].mxu0
  %v198 = vadd.f32 %v148, %v197
  %v199 = vpop.f32.mrb[0].mxu0
  %v200 = vpop.f32.mrb[0].mxu0
  %201 = vdwg.mxu0
  %s202 = scalar_lea.vmem %s1, 24
  %v203 = vld [vmem:[%s202] sm:$0xf]
  %v204 = vpack.c.bf16 %v91, %v91
  %v205 = vpack.c.bf16 %v92, %v92
  %v207 = vsel %vm100, %v203, 0
  %v210 = vsel %vm104, %v204, 0
  %v213 = vsel %vm104, %v205, 0
  %215 = vmatprep.subr.bf16.mxu0 %v213
  %216 = vmatpush1.bf16.msra.mxu0 %v210
  %217 = vmatprep.subr.bf16.mxu0 0
  %218 = vmatpush1.bf16.msra.mxu0 0
  %219 = vmatprep.subr.bf16.mxu0 0
  %220 = vmatpush1.bf16.msra.mxu0 0
  %221 = vmatprep.subr.bf16.mxu0 0
  %222 = vmatpush1.bf16.msra.mxu0 0
  %223 = vmatprep.subr.bf16.mxu0 0
  %224 = vmatpush1.bf16.msra.mxu0 0
  %225 = vmatprep.subr.bf16.mxu0 0
  %226 = vmatpush1.bf16.msra.mxu0 0
  %227 = vmatprep.subr.bf16.mxu0 0
  %228 = vmatpush1.bf16.msra.mxu0 0
  %229 = vmatprep.subr.bf16.mxu0 0
  %230 = vmatpush1.bf16.msra.mxu0 0
  %231 = vmatprep.subr.bf16.mxu0 0
  %232 = vmatpush1.bf16.msra.mxu0 0
  %233 = vmatprep.subr.bf16.mxu0 0
  %234 = vmatpush1.bf16.msra.mxu0 0
  %235 = vmatprep.subr.bf16.mxu0 0
  %236 = vmatpush1.bf16.msra.mxu0 0
  %237 = vmatprep.subr.bf16.mxu0 0
  %238 = vmatpush1.bf16.msra.mxu0 0
  %239 = vmatprep.subr.bf16.mxu0 0
  %240 = vmatpush1.bf16.msra.mxu0 0
  %241 = vmatprep.subr.bf16.mxu0 0
  %242 = vmatpush1.bf16.msra.mxu0 0
  %243 = vmatprep.subr.bf16.mxu0 0
  %244 = vmatpush1.bf16.msra.mxu0 0
  %245 = vmatprep.subr.bf16.mxu0 0
  %246 = vmatpush1.bf16.msra.mxu0 0
  %247 = vmatprep.mubr.bf16.mxu0 0
  %248 = vmatmul.mubr.bf16.gmra.mrb[0].mxu0 %v207
  %v249 = vpop.f32.mrb[0].mxu0
  %v250 = vadd.f32 0.0, %v249
  %v251 = vpop.f32.mrb[0].mxu0
  %v252 = vadd.f32 0.0, %v251
  %v253 = vpop.f32.mrb[0].mxu0
  %v254 = vpop.f32.mrb[0].mxu0
  %255 = vdwg.mxu0
  %v256 = vadd.f32 %v196, %v250
  %v257 = vadd.f32 %v198, %v252
  %258 = vrot.lane.b32.xlu0 %v56, 16
  %v259 = vpop.permute.xlu0 %258
  %260 = vrot.lane.b32.xlu0 %v57, 16
  %v261 = vpop.permute.xlu0 %260
  %v262 = vsel %vm52, %v259, %v261
  %v263 = vsel %vm52, %v261, %v259
  %264 = vrot.lane.b32.xlu0 %v56, 112
  %v265 = vpop.permute.xlu0 %264
  %266 = vrot.lane.b32.xlu0 %v57, 112
  %v267 = vpop.permute.xlu0 %266
  %v268 = vsel %vm86, %v265, %v267
  %v269 = vsel %vm86, %v267, %v265
  %v270 = vsel %vm52, %v268, %v263
  %v271 = vsel %vm53, %v269, %v262
  %v272 = vsel %vm54, %v263, %v268
  %v273 = vsel %vm55, %v262, %v269
  %s274 = scalar_lea.vmem %s1, 4
  %v275 = vld [vmem:[%s274] sm:$0xf]
  %v276 = vpack.c.bf16 %v270, %v270
  %v277 = vpack.c.bf16 %v271, %v271
  %v279 = vsel %vm100, %v275, 0
  %v282 = vsel %vm104, %v276, 0
  %v285 = vsel %vm104, %v277, 0
  %287 = vmatprep.subr.bf16.mxu0 %v285
  %288 = vmatpush1.bf16.msra.mxu0 %v282
  %289 = vmatprep.subr.bf16.mxu0 0
  %290 = vmatpush1.bf16.msra.mxu0 0
  %291 = vmatprep.subr.bf16.mxu0 0
  %292 = vmatpush1.bf16.msra.mxu0 0
  %293 = vmatprep.subr.bf16.mxu0 0
  %294 = vmatpush1.bf16.msra.mxu0 0
  %295 = vmatprep.subr.bf16.mxu0 0
  %296 = vmatpush1.bf16.msra.mxu0 0
  %297 = vmatprep.subr.bf16.mxu0 0
  %298 = vmatpush1.bf16.msra.mxu0 0
  %299 = vmatprep.subr.bf16.mxu0 0
  %300 = vmatpush1.bf16.msra.mxu0 0
  %301 = vmatprep.subr.bf16.mxu0 0
  %302 = vmatpush1.bf16.msra.mxu0 0
  %303 = vmatprep.subr.bf16.mxu0 0
  %304 = vmatpush1.bf16.msra.mxu0 0
  %305 = vmatprep.subr.bf16.mxu0 0
  %306 = vmatpush1.bf16.msra.mxu0 0
  %307 = vmatprep.subr.bf16.mxu0 0
  %308 = vmatpush1.bf16.msra.mxu0 0
  %309 = vmatprep.subr.bf16.mxu0 0
  %310 = vmatpush1.bf16.msra.mxu0 0
  %311 = vmatprep.subr.bf16.mxu0 0
  %312 = vmatpush1.bf16.msra.mxu0 0
  %313 = vmatprep.subr.bf16.mxu0 0
  %314 = vmatpush1.bf16.msra.mxu0 0
  %315 = vmatprep.subr.bf16.mxu0 0
  %316 = vmatpush1.bf16.msra.mxu0 0
  %317 = vmatprep.subr.bf16.mxu0 0
  %318 = vmatpush1.bf16.msra.mxu0 0
  %319 = vmatprep.mubr.bf16.mxu0 0
  %320 = vmatmul.mubr.bf16.gmra.mrb[0].mxu0 %v279
  %v321 = vpop.f32.mrb[0].mxu0
  %v322 = vadd.f32 0.0, %v321
  %v323 = vpop.f32.mrb[0].mxu0
  %v324 = vadd.f32 0.0, %v323
  %v325 = vpop.f32.mrb[0].mxu0
  %v326 = vpop.f32.mrb[0].mxu0
  %327 = vdwg.mxu0
  %v328 = vadd.f32 %v256, %v322
  %v329 = vadd.f32 %v257, %v324
  %s330 = scalar_lea.vmem %s1, 16
  %v331 = vld [vmem:[%s330] sm:$0xf]
  %v332 = vpack.c.bf16 %v56, %v56
  %v333 = vpack.c.bf16 %v57, %v57
  %v335 = vsel %vm100, %v331, 0
  %v338 = vsel %vm104, %v332, 0
  %v341 = vsel %vm104, %v333, 0
  %343 = vmatprep.subr.bf16.mxu0 %v341
  %344 = vmatpush1.bf16.msra.mxu0 %v338
  %345 = vmatprep.subr.bf16.mxu0 0
  %346 = vmatpush1.bf16.msra.mxu0 0
  %347 = vmatprep.subr.bf16.mxu0 0
  %348 = vmatpush1.bf16.msra.mxu0 0
  %349 = vmatprep.subr.bf16.mxu0 0
  %350 = vmatpush1.bf16.msra.mxu0 0
  %351 = vmatprep.subr.bf16.mxu0 0
  %352 = vmatpush1.bf16.msra.mxu0 0
  %353 = vmatprep.subr.bf16.mxu0 0
  %354 = vmatpush1.bf16.msra.mxu0 0
  %355 = vmatprep.subr.bf16.mxu0 0
  %356 = vmatpush1.bf16.msra.mxu0 0
  %357 = vmatprep.subr.bf16.mxu0 0
  %358 = vmatpush1.bf16.msra.mxu0 0
  %359 = vmatprep.subr.bf16.mxu0 0
  %360 = vmatpush1.bf16.msra.mxu0 0
  %361 = vmatprep.subr.bf16.mxu0 0
  %362 = vmatpush1.bf16.msra.mxu0 0
  %363 = vmatprep.subr.bf16.mxu0 0
  %364 = vmatpush1.bf16.msra.mxu0 0
  %365 = vmatprep.subr.bf16.mxu0 0
  %366 = vmatpush1.bf16.msra.mxu0 0
  %367 = vmatprep.subr.bf16.mxu0 0
  %368 = vmatpush1.bf16.msra.mxu0 0
  %369 = vmatprep.subr.bf16.mxu0 0
  %370 = vmatpush1.bf16.msra.mxu0 0
  %371 = vmatprep.subr.bf16.mxu0 0
  %372 = vmatpush1.bf16.msra.mxu0 0
  %373 = vmatprep.subr.bf16.mxu0 0
  %374 = vmatpush1.bf16.msra.mxu0 0
  %375 = vmatprep.mubr.bf16.mxu0 0
  %376 = vmatmul.mubr.bf16.gmra.mrb[0].mxu0 %v335
  %v377 = vpop.f32.mrb[0].mxu0
  %v378 = vadd.f32 0.0, %v377
  %v379 = vpop.f32.mrb[0].mxu0
  %v380 = vadd.f32 0.0, %v379
  %v381 = vpop.f32.mrb[0].mxu0
  %v382 = vpop.f32.mrb[0].mxu0
  %383 = vdwg.mxu0
  %v384 = vadd.f32 %v328, %v378
  %v385 = vadd.f32 %v329, %v380
  %s386 = scalar_lea.vmem %s1, 28
  %v387 = vld [vmem:[%s386] sm:$0xf]
  %v388 = vpack.c.bf16 %v272, %v272
  %v389 = vpack.c.bf16 %v273, %v273
  %v391 = vsel %vm100, %v387, 0
  %v394 = vsel %vm104, %v388, 0
  %v397 = vsel %vm104, %v389, 0
  %399 = vmatprep.subr.bf16.mxu0 %v397
  %400 = vmatpush1.bf16.msra.mxu0 %v394
  %401 = vmatprep.subr.bf16.mxu0 0
  %402 = vmatpush1.bf16.msra.mxu0 0
  %403 = vmatprep.subr.bf16.mxu0 0
  %404 = vmatpush1.bf16.msra.mxu0 0
  %405 = vmatprep.subr.bf16.mxu0 0
  %406 = vmatpush1.bf16.msra.mxu0 0
  %407 = vmatprep.subr.bf16.mxu0 0
  %408 = vmatpush1.bf16.msra.mxu0 0
  %409 = vmatprep.subr.bf16.mxu0 0
  %410 = vmatpush1.bf16.msra.mxu0 0
  %411 = vmatprep.subr.bf16.mxu0 0
  %412 = vmatpush1.bf16.msra.mxu0 0
  %413 = vmatprep.subr.bf16.mxu0 0
  %414 = vmatpush1.bf16.msra.mxu0 0
  %415 = vmatprep.subr.bf16.mxu0 0
  %416 = vmatpush1.bf16.msra.mxu0 0
  %417 = vmatprep.subr.bf16.mxu0 0
  %418 = vmatpush1.bf16.msra.mxu0 0
  %419 = vmatprep.subr.bf16.mxu0 0
  %420 = vmatpush1.bf16.msra.mxu0 0
  %421 = vmatprep.subr.bf16.mxu0 0
  %422 = vmatpush1.bf16.msra.mxu0 0
  %423 = vmatprep.subr.bf16.mxu0 0
  %424 = vmatpush1.bf16.msra.mxu0 0
  %425 = vmatprep.subr.bf16.mxu0 0
  %426 = vmatpush1.bf16.msra.mxu0 0
  %427 = vmatprep.subr.bf16.mxu0 0
  %428 = vmatpush1.bf16.msra.mxu0 0
  %429 = vmatprep.subr.bf16.mxu0 0
  %430 = vmatpush1.bf16.msra.mxu0 0
  %431 = vmatprep.mubr.bf16.mxu0 0
  %432 = vmatmul.mubr.bf16.gmra.mrb[0].mxu0 %v391
  %v433 = vpop.f32.mrb[0].mxu0
  %v434 = vadd.f32 0.0, %v433
  %v435 = vpop.f32.mrb[0].mxu0
  %v436 = vadd.f32 0.0, %v435
  %v437 = vpop.f32.mrb[0].mxu0
  %v438 = vpop.f32.mrb[0].mxu0
  %439 = vdwg.mxu0
  %v440 = vadd.f32 %v384, %v434
  %v441 = vadd.f32 %v385, %v436
  %442 = vrot.lane.b32.xlu0 %v74, 16
  %v443 = vpop.permute.xlu0 %442
  %444 = vrot.lane.b32.xlu0 %v75, 16
  %v445 = vpop.permute.xlu0 %444
  %v446 = vsel %vm52, %v443, %v445
  %v447 = vsel %vm52, %v445, %v443
  %448 = vrot.lane.b32.xlu0 %v74, 112
  %v449 = vpop.permute.xlu0 %448
  %450 = vrot.lane.b32.xlu0 %v75, 112
  %v451 = vpop.permute.xlu0 %450
  %v452 = vsel %vm86, %v449, %v451
  %v453 = vsel %vm86, %v451, %v449
  %v454 = vsel %vm52, %v452, %v447
  %v455 = vsel %vm53, %v453, %v446
  %v456 = vsel %vm54, %v447, %v452
  %v457 = vsel %vm55, %v446, %v453
  %s458 = scalar_lea.vmem %s1, 8
  %v459 = vld [vmem:[%s458] sm:$0xf]
  %v460 = vpack.c.bf16 %v454, %v454
  %v461 = vpack.c.bf16 %v455, %v455
  %v463 = vsel %vm100, %v459, 0
  %v466 = vsel %vm104, %v460, 0
  %v469 = vsel %vm104, %v461, 0
  %471 = vmatprep.subr.bf16.mxu0 %v469
  %472 = vmatpush1.bf16.msra.mxu0 %v466
  %473 = vmatprep.subr.bf16.mxu0 0
  %474 = vmatpush1.bf16.msra.mxu0 0
  %475 = vmatprep.subr.bf16.mxu0 0
  %476 = vmatpush1.bf16.msra.mxu0 0
  %477 = vmatprep.subr.bf16.mxu0 0
  %478 = vmatpush1.bf16.msra.mxu0 0
  %479 = vmatprep.subr.bf16.mxu0 0
  %480 = vmatpush1.bf16.msra.mxu0 0
  %481 = vmatprep.subr.bf16.mxu0 0
  %482 = vmatpush1.bf16.msra.mxu0 0
  %483 = vmatprep.subr.bf16.mxu0 0
  %484 = vmatpush1.bf16.msra.mxu0 0
  %485 = vmatprep.subr.bf16.mxu0 0
  %486 = vmatpush1.bf16.msra.mxu0 0
  %487 = vmatprep.subr.bf16.mxu0 0
  %488 = vmatpush1.bf16.msra.mxu0 0
  %489 = vmatprep.subr.bf16.mxu0 0
  %490 = vmatpush1.bf16.msra.mxu0 0
  %491 = vmatprep.subr.bf16.mxu0 0
  %492 = vmatpush1.bf16.msra.mxu0 0
  %493 = vmatprep.subr.bf16.mxu0 0
  %494 = vmatpush1.bf16.msra.mxu0 0
  %495 = vmatprep.subr.bf16.mxu0 0
  %496 = vmatpush1.bf16.msra.mxu0 0
  %497 = vmatprep.subr.bf16.mxu0 0
  %498 = vmatpush1.bf16.msra.mxu0 0
  %499 = vmatprep.subr.bf16.mxu0 0
  %500 = vmatpush1.bf16.msra.mxu0 0
  %501 = vmatprep.subr.bf16.mxu0 0
  %502 = vmatpush1.bf16.msra.mxu0 0
  %503 = vmatprep.mubr.bf16.mxu0 0
  %504 = vmatmul.mubr.bf16.gmra.mrb[0].mxu0 %v463
  %v505 = vpop.f32.mrb[0].mxu0
  %v506 = vadd.f32 0.0, %v505
  %v507 = vpop.f32.mrb[0].mxu0
  %v508 = vadd.f32 0.0, %v507
  %v509 = vpop.f32.mrb[0].mxu0
  %v510 = vpop.f32.mrb[0].mxu0
  %511 = vdwg.mxu0
  %v512 = vadd.f32 %v440, %v506
  %v513 = vadd.f32 %v441, %v508
  %s514 = scalar_lea.vmem %s1, 20
  %v515 = vld [vmem:[%s514] sm:$0xf]
  %v516 = vpack.c.bf16 %v74, %v74
  %v517 = vpack.c.bf16 %v75, %v75
  %v519 = vsel %vm100, %v515, 0
  %v522 = vsel %vm104, %v516, 0
  %v525 = vsel %vm104, %v517, 0
  %527 = vmatprep.subr.bf16.mxu0 %v525
  %528 = vmatpush1.bf16.msra.mxu0 %v522
  %529 = vmatprep.subr.bf16.mxu0 0
  %530 = vmatpush1.bf16.msra.mxu0 0
  %531 = vmatprep.subr.bf16.mxu0 0
  %532 = vmatpush1.bf16.msra.mxu0 0
  %533 = vmatprep.subr.bf16.mxu0 0
  %534 = vmatpush1.bf16.msra.mxu0 0
  %535 = vmatprep.subr.bf16.mxu0 0
  %536 = vmatpush1.bf16.msra.mxu0 0
  %537 = vmatprep.subr.bf16.mxu0 0
  %538 = vmatpush1.bf16.msra.mxu0 0
  %539 = vmatprep.subr.bf16.mxu0 0
  %540 = vmatpush1.bf16.msra.mxu0 0
  %541 = vmatprep.subr.bf16.mxu0 0
  %542 = vmatpush1.bf16.msra.mxu0 0
  %543 = vmatprep.subr.bf16.mxu0 0
  %544 = vmatpush1.bf16.msra.mxu0 0
  %545 = vmatprep.subr.bf16.mxu0 0
  %546 = vmatpush1.bf16.msra.mxu0 0
  %547 = vmatprep.subr.bf16.mxu0 0
  %548 = vmatpush1.bf16.msra.mxu0 0
  %549 = vmatprep.subr.bf16.mxu0 0
  %550 = vmatpush1.bf16.msra.mxu0 0
  %551 = vmatprep.subr.bf16.mxu0 0
  %552 = vmatpush1.bf16.msra.mxu0 0
  %553 = vmatprep.subr.bf16.mxu0 0
  %554 = vmatpush1.bf16.msra.mxu0 0
  %555 = vmatprep.subr.bf16.mxu0 0
  %556 = vmatpush1.bf16.msra.mxu0 0
  %557 = vmatprep.subr.bf16.mxu0 0
  %558 = vmatpush1.bf16.msra.mxu0 0
  %559 = vmatprep.mubr.bf16.mxu0 0
  %560 = vmatmul.mubr.bf16.gmra.mrb[0].mxu0 %v519
  %v561 = vpop.f32.mrb[0].mxu0
  %v562 = vadd.f32 0.0, %v561
  %v563 = vpop.f32.mrb[0].mxu0
  %v564 = vadd.f32 0.0, %v563
  %v565 = vpop.f32.mrb[0].mxu0
  %v566 = vpop.f32.mrb[0].mxu0
  %567 = vdwg.mxu0
  %v568 = vadd.f32 %v512, %v562
  %v569 = vadd.f32 %v513, %v564
  %s570 = scalar_lea.vmem %s1, 32
  %v571 = vld [vmem:[%s570] sm:$0xf]
  %v572 = vpack.c.bf16 %v456, %v456
  %v573 = vpack.c.bf16 %v457, %v457
  %v575 = vsel %vm100, %v571, 0
  %v578 = vsel %vm104, %v572, 0
  %v581 = vsel %vm104, %v573, 0
  %583 = vmatprep.subr.bf16.mxu0 %v581
  %584 = vmatpush1.bf16.msra.mxu0 %v578
  %585 = vmatprep.subr.bf16.mxu0 0
  %586 = vmatpush1.bf16.msra.mxu0 0
  %587 = vmatprep.subr.bf16.mxu0 0
  %588 = vmatpush1.bf16.msra.mxu0 0
  %589 = vmatprep.subr.bf16.mxu0 0
  %590 = vmatpush1.bf16.msra.mxu0 0
  %591 = vmatprep.subr.bf16.mxu0 0
  %592 = vmatpush1.bf16.msra.mxu0 0
  %593 = vmatprep.subr.bf16.mxu0 0
  %594 = vmatpush1.bf16.msra.mxu0 0
  %595 = vmatprep.subr.bf16.mxu0 0
  %596 = vmatpush1.bf16.msra.mxu0 0
  %597 = vmatprep.subr.bf16.mxu0 0
  %598 = vmatpush1.bf16.msra.mxu0 0
  %599 = vmatprep.subr.bf16.mxu0 0
  %600 = vmatpush1.bf16.msra.mxu0 0
  %601 = vmatprep.subr.bf16.mxu0 0
  %602 = vmatpush1.bf16.msra.mxu0 0
  %603 = vmatprep.subr.bf16.mxu0 0
  %604 = vmatpush1.bf16.msra.mxu0 0
  %605 = vmatprep.subr.bf16.mxu0 0
  %606 = vmatpush1.bf16.msra.mxu0 0
  %607 = vmatprep.subr.bf16.mxu0 0
  %608 = vmatpush1.bf16.msra.mxu0 0
  %609 = vmatprep.subr.bf16.mxu0 0
  %610 = vmatpush1.bf16.msra.mxu0 0
  %611 = vmatprep.subr.bf16.mxu0 0
  %612 = vmatpush1.bf16.msra.mxu0 0
  %613 = vmatprep.subr.bf16.mxu0 0
  %614 = vmatpush1.bf16.msra.mxu0 0
  %615 = vmatprep.mubr.bf16.mxu0 0
  %616 = vmatmul.mubr.bf16.gmra.mrb[0].mxu0 %v575
  %v617 = vpop.f32.mrb[0].mxu0
  %v618 = vadd.f32 0.0, %v617
  %v619 = vpop.f32.mrb[0].mxu0
  %v620 = vadd.f32 0.0, %v619
  %v621 = vpop.f32.mrb[0].mxu0
  %v622 = vpop.f32.mrb[0].mxu0
  %623 = vdwg.mxu0
  %v624 = vadd.f32 %v568, %v618
  %v625 = vadd.f32 %v569, %v620
  %v626 = vld [vmem:[%s2] sm:$0xff]
  %628 = vset.pattern.permute.xlu0 0
  %629 = vperm.xlu0 %628, %v626
  %v630 = vpop.permute.xlu0 %629
  %v632 = vadd.f32 %v624, %v630
  %v633 = vadd.f32 %v625, %v630
  %v634 = vmax.f32 %v632, 0.0
  %v635 = vmax.f32 %v633, 0.0
  %636 = vrot.lane.b32.xlu0 %v634, 1
  %v637 = vpop.permute.xlu0 %636
  %638 = vrot.lane.b32.xlu0 %v635, 1
  %v639 = vpop.permute.xlu0 %638
  %v640 = vsel %vm62, %v637, %v639
  %v641 = vsel %vm62, %v639, %v637
  %642 = vrot.lane.b32.xlu0 %v634, 127
  %v643 = vpop.permute.xlu0 %642
  %644 = vrot.lane.b32.xlu0 %v635, 127
  %v645 = vpop.permute.xlu0 %644
  %v646 = vsel %vm69, %v643, %v645
  %v647 = vsel %vm69, %v645, %v643
  %v648 = vsel %vm48, %v646, %v641
  %v649 = vsel %vm49, %v647, %v640
  %v650 = vsel %vm50, %v641, %v646
  %v651 = vsel %vm51, %v640, %v647
  %652 = vrot.lane.b32.xlu0 %v648, 16
  %v653 = vpop.permute.xlu0 %652
  %654 = vrot.lane.b32.xlu0 %v649, 16
  %v655 = vpop.permute.xlu0 %654
  %v656 = vsel %vm52, %v653, %v655
  %v657 = vsel %vm52, %v655, %v653
  %658 = vrot.lane.b32.xlu0 %v648, 112
  %v659 = vpop.permute.xlu0 %658
  %660 = vrot.lane.b32.xlu0 %v649, 112
  %v661 = vpop.permute.xlu0 %660
  %v662 = vsel %vm86, %v659, %v661
  %v663 = vsel %vm86, %v661, %v659
  %v664 = vsel %vm52, %v662, %v657
  %v665 = vsel %vm53, %v663, %v656
  %v666 = vsel %vm54, %v657, %v662
  %v667 = vsel %vm55, %v656, %v663
  %v668 = vld [vmem:[%s3] sm:$0xf]
  %v669 = vpack.c.bf16 %v664, %v664
  %v670 = vpack.c.bf16 %v665, %v665
  %s671 = scalar_lea.vmem %s3, 12
  %v672 = vld [vmem:[%s671] sm:$0xf]
  %v673 = vpack.c.bf16 %v648, %v648
  %v674 = vpack.c.bf16 %v649, %v649
  %v676 = vsel %vm100, %v672, 0
  %v679 = vsel %vm104, %v673, 0
  %v682 = vsel %vm104, %v674, 0
  %684 = vmatprep.subr.bf16.mxu0 %v682
  %685 = vmatpush1.bf16.msra.mxu0 %v679
  %686 = vmatprep.subr.bf16.mxu0 0
  %687 = vmatpush1.bf16.msra.mxu0 0
  %688 = vmatprep.subr.bf16.mxu0 0
  %689 = vmatpush1.bf16.msra.mxu0 0
  %690 = vmatprep.subr.bf16.mxu0 0
  %691 = vmatpush1.bf16.msra.mxu0 0
  %692 = vmatprep.subr.bf16.mxu0 0
  %693 = vmatpush1.bf16.msra.mxu0 0
  %694 = vmatprep.subr.bf16.mxu0 0
  %695 = vmatpush1.bf16.msra.mxu0 0
  %696 = vmatprep.subr.bf16.mxu0 0
  %697 = vmatpush1.bf16.msra.mxu0 0
  %698 = vmatprep.subr.bf16.mxu0 0
  %699 = vmatpush1.bf16.msra.mxu0 0
  %700 = vmatprep.subr.bf16.mxu0 0
  %701 = vmatpush1.bf16.msra.mxu0 0
  %702 = vmatprep.subr.bf16.mxu0 0
  %703 = vmatpush1.bf16.msra.mxu0 0
  %704 = vmatprep.subr.bf16.mxu0 0
  %705 = vmatpush1.bf16.msra.mxu0 0
  %706 = vmatprep.subr.bf16.mxu0 0
  %707 = vmatpush1.bf16.msra.mxu0 0
  %708 = vmatprep.subr.bf16.mxu0 0
  %709 = vmatpush1.bf16.msra.mxu0 0
  %710 = vmatprep.subr.bf16.mxu0 0
  %711 = vmatpush1.bf16.msra.mxu0 0
  %712 = vmatprep.subr.bf16.mxu0 0
  %713 = vmatpush1.bf16.msra.mxu0 0
  %714 = vmatprep.subr.bf16.mxu0 0
  %715 = vmatpush1.bf16.msra.mxu0 0
  %716 = vmatprep.mubr.bf16.mxu0 0
  %717 = vmatmul.mubr.bf16.gmra.mrb[0].mxu0 %v676
  %v718 = vpop.f32.mrb[0].mxu0
  %v719 = vadd.f32 0.0, %v718
  %v720 = vpop.f32.mrb[0].mxu0
  %v721 = vadd.f32 0.0, %v720
  %v722 = vpop.f32.mrb[0].mxu0
  %v723 = vpop.f32.mrb[0].mxu0
  %724 = vdwg.mxu0
  %v726 = vsel %vm100, %v668, 0
  %v729 = vsel %vm104, %v669, 0
  %v732 = vsel %vm104, %v670, 0
  %734 = vmatprep.subr.bf16.mxu0 %v732
  %735 = vmatpush1.bf16.msra.mxu0 %v729
  %736 = vmatprep.subr.bf16.mxu0 0
  %737 = vmatpush1.bf16.msra.mxu0 0
  %738 = vmatprep.subr.bf16.mxu0 0
  %739 = vmatpush1.bf16.msra.mxu0 0
  %740 = vmatprep.subr.bf16.mxu0 0
  %741 = vmatpush1.bf16.msra.mxu0 0
  %742 = vmatprep.subr.bf16.mxu0 0
  %743 = vmatpush1.bf16.msra.mxu0 0
  %744 = vmatprep.subr.bf16.mxu0 0
  %745 = vmatpush1.bf16.msra.mxu0 0
  %746 = vmatprep.subr.bf16.mxu0 0
  %747 = vmatpush1.bf16.msra.mxu0 0
  %748 = vmatprep.subr.bf16.mxu0 0
  %749 = vmatpush1.bf16.msra.mxu0 0
  %750 = vmatprep.subr.bf16.mxu0 0
  %751 = vmatpush1.bf16.msra.mxu0 0
  %752 = vmatprep.subr.bf16.mxu0 0
  %753 = vmatpush1.bf16.msra.mxu0 0
  %754 = vmatprep.subr.bf16.mxu0 0
  %755 = vmatpush1.bf16.msra.mxu0 0
  %756 = vmatprep.subr.bf16.mxu0 0
  %757 = vmatpush1.bf16.msra.mxu0 0
  %758 = vmatprep.subr.bf16.mxu0 0
  %759 = vmatpush1.bf16.msra.mxu0 0
  %760 = vmatprep.subr.bf16.mxu0 0
  %761 = vmatpush1.bf16.msra.mxu0 0
  %762 = vmatprep.subr.bf16.mxu0 0
  %763 = vmatpush1.bf16.msra.mxu0 0
  %764 = vmatprep.subr.bf16.mxu0 0
  %765 = vmatpush1.bf16.msra.mxu0 0
  %766 = vmatprep.mubr.bf16.mxu0 0
  %767 = vmatmul.mubr.bf16.gmra.mrb[0].mxu0 %v726
  %v768 = vpop.f32.mrb[0].mxu0
  %v769 = vadd.f32 %v719, %v768
  %v770 = vpop.f32.mrb[0].mxu0
  %v771 = vadd.f32 %v721, %v770
  %v772 = vpop.f32.mrb[0].mxu0
  %v773 = vpop.f32.mrb[0].mxu0
  %774 = vdwg.mxu0
  %s775 = scalar_lea.vmem %s3, 24
  %v776 = vld [vmem:[%s775] sm:$0xf]
  %v777 = vpack.c.bf16 %v666, %v666
  %v778 = vpack.c.bf16 %v667, %v667
  %v780 = vsel %vm100, %v776, 0
  %v783 = vsel %vm104, %v777, 0
  %v786 = vsel %vm104, %v778, 0
  %788 = vmatprep.subr.bf16.mxu0 %v786
  %789 = vmatpush1.bf16.msra.mxu0 %v783
  %790 = vmatprep.subr.bf16.mxu0 0
  %791 = vmatpush1.bf16.msra.mxu0 0
  %792 = vmatprep.subr.bf16.mxu0 0
  %793 = vmatpush1.bf16.msra.mxu0 0
  %794 = vmatprep.subr.bf16.mxu0 0
  %795 = vmatpush1.bf16.msra.mxu0 0
  %796 = vmatprep.subr.bf16.mxu0 0
  %797 = vmatpush1.bf16.msra.mxu0 0
  %798 = vmatprep.subr.bf16.mxu0 0
  %799 = vmatpush1.bf16.msra.mxu0 0
  %800 = vmatprep.subr.bf16.mxu0 0
  %801 = vmatpush1.bf16.msra.mxu0 0
  %802 = vmatprep.subr.bf16.mxu0 0
  %803 = vmatpush1.bf16.msra.mxu0 0
  %804 = vmatprep.subr.bf16.mxu0 0
  %805 = vmatpush1.bf16.msra.mxu0 0
  %806 = vmatprep.subr.bf16.mxu0 0
  %807 = vmatpush1.bf16.msra.mxu0 0
  %808 = vmatprep.subr.bf16.mxu0 0
  %809 = vmatpush1.bf16.msra.mxu0 0
  %810 = vmatprep.subr.bf16.mxu0 0
  %811 = vmatpush1.bf16.msra.mxu0 0
  %812 = vmatprep.subr.bf16.mxu0 0
  %813 = vmatpush1.bf16.msra.mxu0 0
  %814 = vmatprep.subr.bf16.mxu0 0
  %815 = vmatpush1.bf16.msra.mxu0 0
  %816 = vmatprep.subr.bf16.mxu0 0
  %817 = vmatpush1.bf16.msra.mxu0 0
  %818 = vmatprep.subr.bf16.mxu0 0
  %819 = vmatpush1.bf16.msra.mxu0 0
  %820 = vmatprep.mubr.bf16.mxu0 0
  %821 = vmatmul.mubr.bf16.gmra.mrb[0].mxu0 %v780
  %v822 = vpop.f32.mrb[0].mxu0
  %v823 = vadd.f32 0.0, %v822
  %v824 = vpop.f32.mrb[0].mxu0
  %v825 = vadd.f32 0.0, %v824
  %v826 = vpop.f32.mrb[0].mxu0
  %v827 = vpop.f32.mrb[0].mxu0
  %828 = vdwg.mxu0
  %v829 = vadd.f32 %v769, %v823
  %v830 = vadd.f32 %v771, %v825
  %831 = vrot.lane.b32.xlu0 %v634, 16
  %v832 = vpop.permute.xlu0 %831
  %833 = vrot.lane.b32.xlu0 %v635, 16
  %v834 = vpop.permute.xlu0 %833
  %v835 = vsel %vm52, %v832, %v834
  %v836 = vsel %vm52, %v834, %v832
  %837 = vrot.lane.b32.xlu0 %v634, 112
  %v838 = vpop.permute.xlu0 %837
  %839 = vrot.lane.b32.xlu0 %v635, 112
  %v840 = vpop.permute.xlu0 %839
  %v841 = vsel %vm86, %v838, %v840
  %v842 = vsel %vm86, %v840, %v838
  %v843 = vsel %vm52, %v841, %v836
  %v844 = vsel %vm53, %v842, %v835
  %v845 = vsel %vm54, %v836, %v841
  %v846 = vsel %vm55, %v835, %v842
  %s847 = scalar_lea.vmem %s3, 4
  %v848 = vld [vmem:[%s847] sm:$0xf]
  %v849 = vpack.c.bf16 %v843, %v843
  %v850 = vpack.c.bf16 %v844, %v844
  %v852 = vsel %vm100, %v848, 0
  %v855 = vsel %vm104, %v849, 0
  %v858 = vsel %vm104, %v850, 0
  %860 = vmatprep.subr.bf16.mxu0 %v858
  %861 = vmatpush1.bf16.msra.mxu0 %v855
  %862 = vmatprep.subr.bf16.mxu0 0
  %863 = vmatpush1.bf16.msra.mxu0 0
  %864 = vmatprep.subr.bf16.mxu0 0
  %865 = vmatpush1.bf16.msra.mxu0 0
  %866 = vmatprep.subr.bf16.mxu0 0
  %867 = vmatpush1.bf16.msra.mxu0 0
  %868 = vmatprep.subr.bf16.mxu0 0
  %869 = vmatpush1.bf16.msra.mxu0 0
  %870 = vmatprep.subr.bf16.mxu0 0
  %871 = vmatpush1.bf16.msra.mxu0 0
  %872 = vmatprep.subr.bf16.mxu0 0
  %873 = vmatpush1.bf16.msra.mxu0 0
  %874 = vmatprep.subr.bf16.mxu0 0
  %875 = vmatpush1.bf16.msra.mxu0 0
  %876 = vmatprep.subr.bf16.mxu0 0
  %877 = vmatpush1.bf16.msra.mxu0 0
  %878 = vmatprep.subr.bf16.mxu0 0
  %879 = vmatpush1.bf16.msra.mxu0 0
  %880 = vmatprep.subr.bf16.mxu0 0
  %881 = vmatpush1.bf16.msra.mxu0 0
  %882 = vmatprep.subr.bf16.mxu0 0
  %883 = vmatpush1.bf16.msra.mxu0 0
  %884 = vmatprep.subr.bf16.mxu0 0
  %885 = vmatpush1.bf16.msra.mxu0 0
  %886 = vmatprep.subr.bf16.mxu0 0
  %887 = vmatpush1.bf16.msra.mxu0 0
  %888 = vmatprep.subr.bf16.mxu0 0
  %889 = vmatpush1.bf16.msra.mxu0 0
  %890 = vmatprep.subr.bf16.mxu0 0
  %891 = vmatpush1.bf16.msra.mxu0 0
  %892 = vmatprep.mubr.bf16.mxu0 0
  %893 = vmatmul.mubr.bf16.gmra.mrb[0].mxu0 %v852
  %v894 = vpop.f32.mrb[0].mxu0
  %v895 = vadd.f32 0.0, %v894
  %v896 = vpop.f32.mrb[0].mxu0
  %v897 = vadd.f32 0.0, %v896
  %v898 = vpop.f32.mrb[0].mxu0
  %v899 = vpop.f32.mrb[0].mxu0
  %900 = vdwg.mxu0
  %v901 = vadd.f32 %v829, %v895
  %v902 = vadd.f32 %v830, %v897
  %s903 = scalar_lea.vmem %s3, 16
  %v904 = vld [vmem:[%s903] sm:$0xf]
  %v905 = vpack.c.bf16 %v634, %v634
  %v906 = vpack.c.bf16 %v635, %v635
  %v908 = vsel %vm100, %v904, 0
  %v911 = vsel %vm104, %v905, 0
  %v914 = vsel %vm104, %v906, 0
  %916 = vmatprep.subr.bf16.mxu0 %v914
  %917 = vmatpush1.bf16.msra.mxu0 %v911
  %918 = vmatprep.subr.bf16.mxu0 0
  %919 = vmatpush1.bf16.msra.mxu0 0
  %920 = vmatprep.subr.bf16.mxu0 0
  %921 = vmatpush1.bf16.msra.mxu0 0
  %922 = vmatprep.subr.bf16.mxu0 0
  %923 = vmatpush1.bf16.msra.mxu0 0
  %924 = vmatprep.subr.bf16.mxu0 0
  %925 = vmatpush1.bf16.msra.mxu0 0
  %926 = vmatprep.subr.bf16.mxu0 0
  %927 = vmatpush1.bf16.msra.mxu0 0
  %928 = vmatprep.subr.bf16.mxu0 0
  %929 = vmatpush1.bf16.msra.mxu0 0
  %930 = vmatprep.subr.bf16.mxu0 0
  %931 = vmatpush1.bf16.msra.mxu0 0
  %932 = vmatprep.subr.bf16.mxu0 0
  %933 = vmatpush1.bf16.msra.mxu0 0
  %934 = vmatprep.subr.bf16.mxu0 0
  %935 = vmatpush1.bf16.msra.mxu0 0
  %936 = vmatprep.subr.bf16.mxu0 0
  %937 = vmatpush1.bf16.msra.mxu0 0
  %938 = vmatprep.subr.bf16.mxu0 0
  %939 = vmatpush1.bf16.msra.mxu0 0
  %940 = vmatprep.subr.bf16.mxu0 0
  %941 = vmatpush1.bf16.msra.mxu0 0
  %942 = vmatprep.subr.bf16.mxu0 0
  %943 = vmatpush1.bf16.msra.mxu0 0
  %944 = vmatprep.subr.bf16.mxu0 0
  %945 = vmatpush1.bf16.msra.mxu0 0
  %946 = vmatprep.subr.bf16.mxu0 0
  %947 = vmatpush1.bf16.msra.mxu0 0
  %948 = vmatprep.mubr.bf16.mxu0 0
  %949 = vmatmul.mubr.bf16.gmra.mrb[0].mxu0 %v908
  %v950 = vpop.f32.mrb[0].mxu0
  %v951 = vadd.f32 0.0, %v950
  %v952 = vpop.f32.mrb[0].mxu0
  %v953 = vadd.f32 0.0, %v952
  %v954 = vpop.f32.mrb[0].mxu0
  %v955 = vpop.f32.mrb[0].mxu0
  %956 = vdwg.mxu0
  %v957 = vadd.f32 %v901, %v951
  %v958 = vadd.f32 %v902, %v953
  %s959 = scalar_lea.vmem %s3, 28
  %v960 = vld [vmem:[%s959] sm:$0xf]
  %v961 = vpack.c.bf16 %v845, %v845
  %v962 = vpack.c.bf16 %v846, %v846
  %v964 = vsel %vm100, %v960, 0
  %v967 = vsel %vm104, %v961, 0
  %v970 = vsel %vm104, %v962, 0
  %972 = vmatprep.subr.bf16.mxu0 %v970
  %973 = vmatpush1.bf16.msra.mxu0 %v967
  %974 = vmatprep.subr.bf16.mxu0 0
  %975 = vmatpush1.bf16.msra.mxu0 0
  %976 = vmatprep.subr.bf16.mxu0 0
  %977 = vmatpush1.bf16.msra.mxu0 0
  %978 = vmatprep.subr.bf16.mxu0 0
  %979 = vmatpush1.bf16.msra.mxu0 0
  %980 = vmatprep.subr.bf16.mxu0 0
  %981 = vmatpush1.bf16.msra.mxu0 0
  %982 = vmatprep.subr.bf16.mxu0 0
  %983 = vmatpush1.bf16.msra.mxu0 0
  %984 = vmatprep.subr.bf16.mxu0 0
  %985 = vmatpush1.bf16.msra.mxu0 0
  %986 = vmatprep.subr.bf16.mxu0 0
  %987 = vmatpush1.bf16.msra.mxu0 0
  %988 = vmatprep.subr.bf16.mxu0 0
  %989 = vmatpush1.bf16.msra.mxu0 0
  %990 = vmatprep.subr.bf16.mxu0 0
  %991 = vmatpush1.bf16.msra.mxu0 0
  %992 = vmatprep.subr.bf16.mxu0 0
  %993 = vmatpush1.bf16.msra.mxu0 0
  %994 = vmatprep.subr.bf16.mxu0 0
  %995 = vmatpush1.bf16.msra.mxu0 0
  %996 = vmatprep.subr.bf16.mxu0 0
  %997 = vmatpush1.bf16.msra.mxu0 0
  %998 = vmatprep.subr.bf16.mxu0 0
  %999 = vmatpush1.bf16.msra.mxu0 0
  %1000 = vmatprep.subr.bf16.mxu0 0
  %1001 = vmatpush1.bf16.msra.mxu0 0
  %1002 = vmatprep.subr.bf16.mxu0 0
  %1003 = vmatpush1.bf16.msra.mxu0 0
  %1004 = vmatprep.mubr.bf16.mxu0 0
  %1005 = vmatmul.mubr.bf16.gmra.mrb[0].mxu0 %v964
  %v1006 = vpop.f32.mrb[0].mxu0
  %v1007 = vadd.f32 0.0, %v1006
  %v1008 = vpop.f32.mrb[0].mxu0
  %v1009 = vadd.f32 0.0, %v1008
  %v1010 = vpop.f32.mrb[0].mxu0
  %v1011 = vpop.f32.mrb[0].mxu0
  %1012 = vdwg.mxu0
  %v1013 = vadd.f32 %v957, %v1007
  %v1014 = vadd.f32 %v958, %v1009
  %1015 = vrot.lane.b32.xlu0 %v650, 16
  %v1016 = vpop.permute.xlu0 %1015
  %1017 = vrot.lane.b32.xlu0 %v651, 16
  %v1018 = vpop.permute.xlu0 %1017
  %v1019 = vsel %vm52, %v1016, %v1018
  %v1020 = vsel %vm52, %v1018, %v1016
  %1021 = vrot.lane.b32.xlu0 %v650, 112
  %v1022 = vpop.permute.xlu0 %1021
  %1023 = vrot.lane.b32.xlu0 %v651, 112
  %v1024 = vpop.permute.xlu0 %1023
  %v1025 = vsel %vm86, %v1022, %v1024
  %v1026 = vsel %vm86, %v1024, %v1022
  %v1027 = vsel %vm52, %v1025, %v1020
  %v1028 = vsel %vm53, %v1026, %v1019
  %v1029 = vsel %vm54, %v1020, %v1025
  %v1030 = vsel %vm55, %v1019, %v1026
  %s1031 = scalar_lea.vmem %s3, 8
  %v1032 = vld [vmem:[%s1031] sm:$0xf]
  %v1033 = vpack.c.bf16 %v1027, %v1027
  %v1034 = vpack.c.bf16 %v1028, %v1028
  %v1036 = vsel %vm100, %v1032, 0
  %v1039 = vsel %vm104, %v1033, 0
  %v1042 = vsel %vm104, %v1034, 0
  %1044 = vmatprep.subr.bf16.mxu0 %v1042
  %1045 = vmatpush1.bf16.msra.mxu0 %v1039
  %1046 = vmatprep.subr.bf16.mxu0 0
  %1047 = vmatpush1.bf16.msra.mxu0 0
  %1048 = vmatprep.subr.bf16.mxu0 0
  %1049 = vmatpush1.bf16.msra.mxu0 0
  %1050 = vmatprep.subr.bf16.mxu0 0
  %1051 = vmatpush1.bf16.msra.mxu0 0
  %1052 = vmatprep.subr.bf16.mxu0 0
  %1053 = vmatpush1.bf16.msra.mxu0 0
  %1054 = vmatprep.subr.bf16.mxu0 0
  %1055 = vmatpush1.bf16.msra.mxu0 0
  %1056 = vmatprep.subr.bf16.mxu0 0
  %1057 = vmatpush1.bf16.msra.mxu0 0
  %1058 = vmatprep.subr.bf16.mxu0 0
  %1059 = vmatpush1.bf16.msra.mxu0 0
  %1060 = vmatprep.subr.bf16.mxu0 0
  %1061 = vmatpush1.bf16.msra.mxu0 0
  %1062 = vmatprep.subr.bf16.mxu0 0
  %1063 = vmatpush1.bf16.msra.mxu0 0
  %1064 = vmatprep.subr.bf16.mxu0 0
  %1065 = vmatpush1.bf16.msra.mxu0 0
  %1066 = vmatprep.subr.bf16.mxu0 0
  %1067 = vmatpush1.bf16.msra.mxu0 0
  %1068 = vmatprep.subr.bf16.mxu0 0
  %1069 = vmatpush1.bf16.msra.mxu0 0
  %1070 = vmatprep.subr.bf16.mxu0 0
  %1071 = vmatpush1.bf16.msra.mxu0 0
  %1072 = vmatprep.subr.bf16.mxu0 0
  %1073 = vmatpush1.bf16.msra.mxu0 0
  %1074 = vmatprep.subr.bf16.mxu0 0
  %1075 = vmatpush1.bf16.msra.mxu0 0
  %1076 = vmatprep.mubr.bf16.mxu0 0
  %1077 = vmatmul.mubr.bf16.gmra.mrb[0].mxu0 %v1036
  %v1078 = vpop.f32.mrb[0].mxu0
  %v1079 = vadd.f32 0.0, %v1078
  %v1080 = vpop.f32.mrb[0].mxu0
  %v1081 = vadd.f32 0.0, %v1080
  %v1082 = vpop.f32.mrb[0].mxu0
  %v1083 = vpop.f32.mrb[0].mxu0
  %1084 = vdwg.mxu0
  %v1085 = vadd.f32 %v1013, %v1079
  %v1086 = vadd.f32 %v1014, %v1081
  %s1087 = scalar_lea.vmem %s3, 20
  %v1088 = vld [vmem:[%s1087] sm:$0xf]
  %v1089 = vpack.c.bf16 %v650, %v650
  %v1090 = vpack.c.bf16 %v651, %v651
  %v1092 = vsel %vm100, %v1088, 0
  %v1095 = vsel %vm104, %v1089, 0
  %v1098 = vsel %vm104, %v1090, 0
  %1100 = vmatprep.subr.bf16.mxu0 %v1098
  %1101 = vmatpush1.bf16.msra.mxu0 %v1095
  %1102 = vmatprep.subr.bf16.mxu0 0
  %1103 = vmatpush1.bf16.msra.mxu0 0
  %1104 = vmatprep.subr.bf16.mxu0 0
  %1105 = vmatpush1.bf16.msra.mxu0 0
  %1106 = vmatprep.subr.bf16.mxu0 0
  %1107 = vmatpush1.bf16.msra.mxu0 0
  %1108 = vmatprep.subr.bf16.mxu0 0
  %1109 = vmatpush1.bf16.msra.mxu0 0
  %1110 = vmatprep.subr.bf16.mxu0 0
  %1111 = vmatpush1.bf16.msra.mxu0 0
  %1112 = vmatprep.subr.bf16.mxu0 0
  %1113 = vmatpush1.bf16.msra.mxu0 0
  %1114 = vmatprep.subr.bf16.mxu0 0
  %1115 = vmatpush1.bf16.msra.mxu0 0
  %1116 = vmatprep.subr.bf16.mxu0 0
  %1117 = vmatpush1.bf16.msra.mxu0 0
  %1118 = vmatprep.subr.bf16.mxu0 0
  %1119 = vmatpush1.bf16.msra.mxu0 0
  %1120 = vmatprep.subr.bf16.mxu0 0
  %1121 = vmatpush1.bf16.msra.mxu0 0
  %1122 = vmatprep.subr.bf16.mxu0 0
  %1123 = vmatpush1.bf16.msra.mxu0 0
  %1124 = vmatprep.subr.bf16.mxu0 0
  %1125 = vmatpush1.bf16.msra.mxu0 0
  %1126 = vmatprep.subr.bf16.mxu0 0
  %1127 = vmatpush1.bf16.msra.mxu0 0
  %1128 = vmatprep.subr.bf16.mxu0 0
  %1129 = vmatpush1.bf16.msra.mxu0 0
  %1130 = vmatprep.subr.bf16.mxu0 0
  %1131 = vmatpush1.bf16.msra.mxu0 0
  %1132 = vmatprep.mubr.bf16.mxu0 0
  %1133 = vmatmul.mubr.bf16.gmra.mrb[0].mxu0 %v1092
  %v1134 = vpop.f32.mrb[0].mxu0
  %v1135 = vadd.f32 0.0, %v1134
  %v1136 = vpop.f32.mrb[0].mxu0
  %v1137 = vadd.f32 0.0, %v1136
  %v1138 = vpop.f32.mrb[0].mxu0
  %v1139 = vpop.f32.mrb[0].mxu0
  %1140 = vdwg.mxu0
  %v1141 = vadd.f32 %v1085, %v1135
  %v1142 = vadd.f32 %v1086, %v1137
  %s1143 = scalar_lea.vmem %s3, 32
  %v1144 = vld [vmem:[%s1143] sm:$0xf]
  %v1145 = vpack.c.bf16 %v1029, %v1029
  %v1146 = vpack.c.bf16 %v1030, %v1030
  %v1148 = vsel %vm100, %v1144, 0
  %v1151 = vsel %vm104, %v1145, 0
  %v1154 = vsel %vm104, %v1146, 0
  %1156 = vmatprep.subr.bf16.mxu0 %v1154
  %1157 = vmatpush1.bf16.msra.mxu0 %v1151
  %1158 = vmatprep.subr.bf16.mxu0 0
  %1159 = vmatpush1.bf16.msra.mxu0 0
  %1160 = vmatprep.subr.bf16.mxu0 0
  %1161 = vmatpush1.bf16.msra.mxu0 0
  %1162 = vmatprep.subr.bf16.mxu0 0
  %1163 = vmatpush1.bf16.msra.mxu0 0
  %1164 = vmatprep.subr.bf16.mxu0 0
  %1165 = vmatpush1.bf16.msra.mxu0 0
  %1166 = vmatprep.subr.bf16.mxu0 0
  %1167 = vmatpush1.bf16.msra.mxu0 0
  %1168 = vmatprep.subr.bf16.mxu0 0
  %1169 = vmatpush1.bf16.msra.mxu0 0
  %1170 = vmatprep.subr.bf16.mxu0 0
  %1171 = vmatpush1.bf16.msra.mxu0 0
  %1172 = vmatprep.subr.bf16.mxu0 0
  %1173 = vmatpush1.bf16.msra.mxu0 0
  %1174 = vmatprep.subr.bf16.mxu0 0
  %1175 = vmatpush1.bf16.msra.mxu0 0
  %1176 = vmatprep.subr.bf16.mxu0 0
  %1177 = vmatpush1.bf16.msra.mxu0 0
  %1178 = vmatprep.subr.bf16.mxu0 0
  %1179 = vmatpush1.bf16.msra.mxu0 0
  %1180 = vmatprep.subr.bf16.mxu0 0
  %1181 = vmatpush1.bf16.msra.mxu0 0
  %1182 = vmatprep.subr.bf16.mxu0 0
  %1183 = vmatpush1.bf16.msra.mxu0 0
  %1184 = vmatprep.subr.bf16.mxu0 0
  %1185 = vmatpush1.bf16.msra.mxu0 0
  %1186 = vmatprep.subr.bf16.mxu0 0
  %1187 = vmatpush1.bf16.msra.mxu0 0
  %1188 = vmatprep.mubr.bf16.mxu0 0
  %1189 = vmatmul.mubr.bf16.gmra.mrb[0].mxu0 %v1148
  %v1190 = vpop.f32.mrb[0].mxu0
  %v1191 = vadd.f32 0.0, %v1190
  %v1192 = vpop.f32.mrb[0].mxu0
  %v1193 = vadd.f32 0.0, %v1192
  %v1194 = vpop.f32.mrb[0].mxu0
  %v1195 = vpop.f32.mrb[0].mxu0
  %1196 = vdwg.mxu0
  %v1197 = vadd.f32 %v1141, %v1191
  %v1198 = vadd.f32 %v1142, %v1193
  %v1199 = vld [vmem:[%s4] sm:$0xff]
  %1201 = vset.pattern.permute.xlu0 0
  %1202 = vperm.xlu0 %1201, %v1199
  %v1203 = vpop.permute.xlu0 %1202
  %v1205 = vadd.f32 %v1197, %v1203
  %v1206 = vadd.f32 %v1198, %v1203
  %v1207 = vadd.f32 %v56, %v1205
  %v1208 = vadd.f32 %v57, %v1206
  %1209 = vst [vmem:[%s5] sm:$0xff] %v1207
  %1210 = vst [vmem:[%s5 + $0x8] sm:$0xff] %v1208
  // Predicated region
  $region22: #{resblock_forward.1} parent=0 // pred_check
    _
  $region23: #{resblock_forward.1} parent=0 // pred_check_branch
    %1212 = sbr.rel (0) target = $region25
  $region24: #{resblock_forward.1} parent=0 // pred_region
    _
  $region25: #{resblock_forward.1} parent=0 // pred_fallthru
    _
  // Predicated region
  $region26: #{resblock_forward.1} parent=0 // pred_check
    _
  $region27: #{resblock_forward.1} parent=0 // pred_check_branch
    %1214 = sbr.rel (0) target = $region29
  $region28: #{resblock_forward.1} parent=0 // pred_region
    _
  $region29: #{resblock_forward.1} parent=0 // pred_fallthru
    _

</llo_original>
